<compile_context>
chip_gen: v6e
topology: v6e:2x2x1
jax: 0.10.0
libtpu: 0.0.40
codegen_flags: <defaults>
</compile_context>

<pallas_src>
import jax
import jax.numpy as jnp
from jax.experimental import pallas as pl
from jax.experimental.pallas import tpu as pltpu

LN_EPS = 0.1        # LayerNorm eps from the module __init__
L2_EPS = 1e-12      # F.normalize default eps


def _round_up(n, m):
    return (n + m - 1) // m * m


def _swish(x):
    return x * jax.nn.sigmoid(x)


def _layernorm(h, gamma, beta, eps):
    mean = jnp.mean(h, axis=-1, keepdims=True)
    var = jnp.mean((h - mean) * (h - mean), axis=-1, keepdims=True)
    return (h - mean) * jax.lax.rsqrt(var + eps) * gamma + beta


def encoder_kernel(
    x_ref,        # (TB, TK)        bf16  pipelined input tile
    w1_ref,       # (TK, H)         bf16  fc1 K-slab (streamed)
    w2_ref,       # (H,  H)         bf16  resident
    w3_ref,       # (H,  H)         bf16  resident
    wh_ref,       # (H,  2*Lpad)    bf16  fused mu/logvar heads, lane-padded
    vec_ref,      # (16, H)         f32   rows 0..8 = b1,g1,be1,b2,g2,be2,b3,g3,be3
    bh_ref,       # (1,  2*Lpad)    f32   fused head bias, lane-padded
    out_ref,      # (TB, 2*Lpad)    f32
    acc_ref,      # (TB, H)         f32   fc1 accumulator
    ss_ref,       # (TB, 1)         f32   sum-of-squares accumulator
):
    k = pl.program_id(1)
    nk = pl.num_programs(1)

    @pl.when(k == 0)
    def _init():
        acc_ref[...] = jnp.zeros_like(acc_ref)
        ss_ref[...] = jnp.zeros_like(ss_ref)

    # Accumulate fc1 partial product (bf16 MXU, f32 acc) and the L2 sum-of-squares.
    xt = x_ref[...]
    xt32 = xt.astype(jnp.float32)
    ss_ref[...] += jnp.sum(xt32 * xt32, axis=-1, keepdims=True)
    acc_ref[...] += jnp.dot(xt, w1_ref[...], preferred_element_type=jnp.float32)

    # TODO(synk): F.dropout(x, dropout_prob, training=self.training) is treated
    # in eval mode (identity); training-mode stochastic dropout would need
    # pltpu.prng_seed / prng_random_bits (seeded per batch tile).

    @pl.when(k == nk - 1)
    def _finalize():
        vecs = vec_ref[...]
        b1, g1, be1 = vecs[0:1], vecs[1:2], vecs[2:3]
        b2, g2, be2 = vecs[3:4], vecs[4:5], vecs[5:6]
        b3, g3, be3 = vecs[6:7], vecs[7:8], vecs[8:9]

        # F.normalize folded in post-matmul:
        #   normalize(x) @ W1 = (x @ W1) * rsqrt(max(sum(x^2), eps^2))
        # max(sqrt(s), 1e-12) == sqrt(max(s, 1e-24)), so this matches F.normalize.
        inv = jax.lax.rsqrt(jnp.maximum(ss_ref[...], L2_EPS * L2_EPS))
        z1 = acc_ref[...] * inv + b1
        h1 = _layernorm(_swish(z1), g1, be1, LN_EPS)

        # h2 = ln2(swish(fc2(h1) + h1))   (bf16 MXU operands, f32 math elsewhere)
        z2 = jnp.dot(h1.astype(jnp.bfloat16), w2_ref[...],
                     preferred_element_type=jnp.float32) + b2
        h2 = _layernorm(_swish(z2 + h1), g2, be2, LN_EPS)

        # h3 = ln3(swish(fc3(h2) + h1 + h2))
        z3 = jnp.dot(h2.astype(jnp.bfloat16), w3_ref[...],
                     preferred_element_type=jnp.float32) + b3
        h3 = _layernorm(_swish(z3 + h1 + h2), g3, be3, LN_EPS)

        # Fused mu/logvar heads: one lane-dense (TB, 2*Lpad) store.
        out_ref[...] = (
            jnp.dot(h3.astype(jnp.bfloat16), wh_ref[...],
                    preferred_element_type=jnp.float32) + bh_ref[...]
        ).astype(out_ref.dtype)


def _query_vmem_limit():
    """~100 MB on v5e/v6e (128 MiB VMEM), ~54 MB on v7x (64 MiB VMEM)."""
    try:
        cap = int(pltpu.get_tpu_info().vmem_capacity_bytes)
    except Exception:
        cap = 64 * 1024 * 1024  # conservative fallback valid on all generations
    return min(int(cap * 0.85), 100 * 1024 * 1024)


def encoder_forward(x, params, *, block_b=512, block_k=1024, min_batch_tiles=1):
    """x: (B, input_dim) f32.  params: dict of f32 Linear/LayerNorm params with
    (in, out) weight layout (w1,b1,g1,be1,w2,...,wmu,bmu,wlv,blv).
    Returns (mu, logvar) in f32.  On v7x pass min_batch_tiles=2 so the
    'parallel' batch axis keeps both TensorCores busy."""
    assert block_k % 128 == 0, "block_k must be a multiple of 128"

    B, D = x.shape
    H = params["w1"].shape[1]
    latent_dim = params["wmu"].shape[1]

    # Lane-pad each head to a multiple of 128 -> lane-dense output slab.
    Lpad = _round_up(latent_dim, 128)
    two_lp = 2 * Lpad

    # Batch tiling (sublane axis): TB multiple of 8, pad B up to a TB multiple.
    TB = min(_round_up(B, 8), _round_up(block_b, 8))
    if min_batch_tiles > 1:
        TB = min(TB, _round_up(-(-B // min_batch_tiles), 8))
    Bp = _round_up(B, TB)

    # K tiling of the fc1 contraction (input_dim).
    w1 = params["w1"]
    if D <= block_k:
        TK, Dp = D, D                      # single K step, full-dim block
    else:
        TK = block_k                       # multiple of 128
        Dp = _round_up(D, TK)

    if Dp != D:
        x = jnp.pad(x, ((0, 0), (0, Dp - D)))
        w1 = jnp.pad(w1, ((0, Dp - D), (0, 0)))   # zero rows: no effect on dot / sumsq
    if Bp != B:
        x = jnp.pad(x, ((0, Bp - B), (0, 0)))

    # bf16 matmul operands (f32 accumulation happens inside the kernel).
    x_bf = x.astype(jnp.bfloat16)
    w1_bf = w1.astype(jnp.bfloat16)
    w2_bf = params["w2"].astype(jnp.bfloat16)
    w3_bf = params["w3"].astype(jnp.bfloat16)
    wmu_p = jnp.pad(params["wmu"], ((0, 0), (0, Lpad - latent_dim)))
    wlv_p = jnp.pad(params["wlv"], ((0, 0), (0, Lpad - latent_dim)))
    wh_bf = jnp.concatenate([wmu_p, wlv_p], axis=1).astype(jnp.bfloat16)  # (H, 2*Lpad)
    bh = jnp.concatenate(
        [jnp.pad(params["bmu"], ((0, 0), (0, Lpad - latent_dim))),
         jnp.pad(params["blv"], ((0, 0), (0, Lpad - latent_dim)))], axis=1
    ).astype(jnp.float32)                                                  # (1, 2*Lpad)

    # Pack the nine (1, H) bias / gamma / beta rows into one (16, H) operand.
    vec_rows = jnp.concatenate(
        [params[k] for k in ("b1", "g1", "be1", "b2", "g2", "be2", "b3", "g3", "be3")],
        axis=0,
    ).astype(jnp.float32)                                                  # (9, H)
    vecs = jnp.pad(vec_rows, ((0, 16 - 9), (0, 0)))                        # (16, H)

    grid = (Bp // TB, Dp // TK)
    n_btiles = Bp // TB
    vmem_limit = _query_vmem_limit()

    const = lambda i, k: (0, 0)

    def _const_spec(shape, single_buffer):
        if single_buffer:
            # Constant-index operands never change: single-buffer them to free VMEM.
            return pl.BlockSpec(shape, const, pipeline_mode=pl.Buffered(1))
        return pl.BlockSpec(shape, const)

    # Cost estimate with the true w1 HBM stream (re-read once per batch tile).
    flops = 2 * Bp * (Dp * H + 2 * H * H + H * two_lp)
    transcendentals = Bp * (3 * H + 4)  # sigmoids + normalize/LN rsqrts
    bytes_accessed = (
        2 * Bp * Dp                      # x (bf16)
        + 2 * n_btiles * Dp * H          # w1 re-streamed per batch tile (bf16)
        + 2 * (2 * H * H + H * two_lp)   # resident w2/w3/heads (bf16), read once
        + 4 * (16 * H + two_lp)          # packed vecs + head bias (f32)
        + 4 * Bp * two_lp                # output (f32)
    )

    def _build(single_buffer_consts):
        in_specs = [
            pl.BlockSpec((TB, TK), lambda i, k: (i, k)),        # x tile (pipelined)
            pl.BlockSpec((TK, H), lambda i, k: (k, 0)),         # w1 K-slab (streamed)
            _const_spec((H, H), single_buffer_consts),          # w2
            _const_spec((H, H), single_buffer_consts),          # w3
            _const_spec((H, two_lp), single_buffer_consts),     # fused heads weight
            _const_spec((16, H), single_buffer_consts),         # packed bias/LN rows
            _const_spec((1, two_lp), single_buffer_consts),     # fused heads bias
        ]
        out_spec = pl.BlockSpec((TB, two_lp), lambda i, k: (i, 0))
        return pl.pallas_call(
            encoder_kernel,
            out_shape=jax.ShapeDtypeStruct((Bp, two_lp), jnp.float32),
            grid_spec=pltpu.PrefetchScalarGridSpec(
                num_scalar_prefetch=0,
                grid=grid,
                in_specs=in_specs,
                out_specs=out_spec,
                scratch_shapes=[
                    pltpu.VMEM((TB, H), jnp.float32),   # fc1 accumulator
                    pltpu.VMEM((TB, 1), jnp.float32),   # sum-of-squares accumulator
                ],
            ),
            compiler_params=pltpu.CompilerParams(
                dimension_semantics=("parallel", "arbitrary"),
                vmem_limit_bytes=int(vmem_limit),
            ),
            cost_estimate=pl.CostEstimate(
                flops=int(flops),
                transcendentals=int(transcendentals),
                bytes_accessed=int(bytes_accessed),
            ),
        )

    args = (x_bf, w1_bf, w2_bf, w3_bf, wh_bf, vecs, bh)
    try:
        out = _build(True)(*args)
    except Exception:
        # pipeline_mode=pl.Buffered(1) not supported on this jax/mosaic build:
        # fall back to default double-buffered constant operands.
        out = _build(False)(*args)

    out = out[:B]
    mu = out[:, :latent_dim]
    logvar = out[:, Lpad:Lpad + latent_dim]
    return mu, logvar


def init_params(key, input_dim, hidden_dim, latent_dim):
    ks = jax.random.split(key, 5)
    scale = 0.05

    def lin(k, fan_in, fan_out):
        kw, kb = jax.random.split(k)
        w = scale * jax.random.normal(kw, (fan_in, fan_out), jnp.float32)  # (in, out)
        b = scale * jax.random.normal(kb, (fan_out,), jnp.float32)
        return w, b.reshape(1, fan_out)

    w1, b1 = lin(ks[0], input_dim, hidden_dim)
    w2, b2 = lin(ks[1], hidden_dim, hidden_dim)
    w3, b3 = lin(ks[2], hidden_dim, hidden_dim)
    wmu, bmu = lin(ks[3], hidden_dim, latent_dim)
    wlv, blv = lin(ks[4], hidden_dim, latent_dim)

    ones = jnp.ones((1, hidden_dim), jnp.float32)
    zeros = jnp.zeros((1, hidden_dim), jnp.float32)

    return dict(
        w1=w1, b1=b1, g1=ones, be1=zeros,
        w2=w2, b2=b2, g2=ones, be2=zeros,
        w3=w3, b3=b3, g3=ones, be3=zeros,
        wmu=wmu, bmu=bmu, wlv=wlv, blv=blv,
    )


def reference_forward(x, p):
    """Pure-JAX f32 reference of the same forward pass (un-fused heads)."""
    norm = jnp.sqrt(jnp.sum(x * x, axis=-1, keepdims=True))
    x = x / jnp.maximum(norm, L2_EPS)
    z1 = x @ p["w1"] + p["b1"]
    h1 = _layernorm(_swish(z1), p["g1"], p["be1"], LN_EPS)
    z2 = h1 @ p["w2"] + p["b2"]
    h2 = _layernorm(_swish(z2 + h1), p["g2"], p["be2"], LN_EPS)
    z3 = h2 @ p["w3"] + p["b3"]
    h3 = _layernorm(_swish(z3 + h1 + h2), p["g3"], p["be3"], LN_EPS)
    return h3 @ p["wmu"] + p["bmu"], h3 @ p["wlv"] + p["blv"]


if __name__ == "__main__":
    # Small demo shapes; block_b=8 / block_k=128 exercise both grid axes
    # (grid = (2 batch tiles, 2 K tiles)).
    B, input_dim, hidden_dim, latent_dim = 16, 256, 32, 16

    key = jax.random.PRNGKey(0)
    kx, kp = jax.random.split(key)
    x = jax.random.normal(kx, (B, input_dim), jnp.float32)
    params = init_params(kp, input_dim, hidden_dim, latent_dim)

    mu, logvar = encoder_forward(x, params, block_b=8, block_k=128)
    jax.block_until_ready((mu, logvar))

    # bf16 matmul operands vs. f32 reference -> relaxed tolerance.
    mu_ref, lv_ref = reference_forward(x, params)
    assert mu.shape == mu_ref.shape and logvar.shape == lv_ref.shape
    assert jnp.allclose(mu, mu_ref, atol=2e-2, rtol=2e-2)
    assert jnp.allclose(logvar, lv_ref, atol=2e-2, rtol=2e-2)

    print("KERNEL_OK")
</pallas_src>

<mosaic_0001>
module attributes {stable_mosaic.version = 11 : i64} {
  func.func @encoder_kernel(%arg0: i32, %arg1: i32, %arg2: memref<8x128xbf16, #tpu.memory_space<vmem>>, %arg3: memref<128x32xbf16, #tpu.memory_space<vmem>>, %arg4: memref<32x32xbf16, #tpu.memory_space<vmem>>, %arg5: memref<32x32xbf16, #tpu.memory_space<vmem>>, %arg6: memref<32x256xbf16, #tpu.memory_space<vmem>>, %arg7: memref<16x32xf32, #tpu.memory_space<vmem>>, %arg8: memref<1x256xf32, #tpu.memory_space<vmem>>, %arg9: memref<8x256xf32, #tpu.memory_space<vmem>>, %arg10: memref<8x32xf32, #tpu.memory_space<vmem>>, %arg11: memref<8x1xf32, #tpu.memory_space<vmem>>) attributes {dimension_semantics = [#tpu.dimension_semantics<parallel>, #tpu.dimension_semantics<arbitrary>], iteration_bounds = array<i64: 2, 2>, scalar_prefetch = 0 : i64, scratch_operands = 2 : i64, tpu.core_type = #tpu.core_type<tc>, window_params = [{transform_indices = @transform_0, window_bounds = array<i64: 8, 128>}, {transform_indices = @transform_1, window_bounds = array<i64: 128, 32>}, {pipeline_mode = #tpu.pipeline_mode<synchronous>, transform_indices = @transform_2, window_bounds = array<i64: 32, 32>}, {pipeline_mode = #tpu.pipeline_mode<synchronous>, transform_indices = @transform_3, window_bounds = array<i64: 32, 32>}, {pipeline_mode = #tpu.pipeline_mode<synchronous>, transform_indices = @transform_4, window_bounds = array<i64: 32, 256>}, {pipeline_mode = #tpu.pipeline_mode<synchronous>, transform_indices = @transform_5, window_bounds = array<i64: 16, 32>}, {pipeline_mode = #tpu.pipeline_mode<synchronous>, transform_indices = @transform_6, window_bounds = array<i64: 1, 256>}, {transform_indices = @transform_7, window_bounds = array<i64: 8, 256>}]} {
    %c0_i32 = arith.constant 0 : i32
    %0 = arith.cmpi eq, %arg1, %c0_i32 : i32
    %1 = arith.extui %0 : i1 to i32
    %c0_i32_0 = arith.constant 0 : i32
    %2 = arith.cmpi ne, %1, %c0_i32_0 : i32
    scf.if %2 {
      %cst_14 = arith.constant 0.000000e+00 : f32
      %19 = vector.broadcast %cst_14 : f32 to vector<8x32xf32>
      %c0_15 = arith.constant 0 : index
      %c0_16 = arith.constant 0 : index
      %20 = vector.load %arg10[%c0_15, %c0_16] : memref<8x32xf32, #tpu.memory_space<vmem>>, vector<8x32xf32>
      tpu.vector_store %arg10[%c0_15, %c0_16], %19 {strides = array<i32>} : memref<8x32xf32, #tpu.memory_space<vmem>>, vector<8x32xf32>,
      %cst_17 = arith.constant 0.000000e+00 : f32
      %21 = vector.broadcast %cst_17 : f32 to vector<8x1xf32>
      %c0_18 = arith.constant 0 : index
      %c0_19 = arith.constant 0 : index
      %22 = vector.load %arg11[%c0_18, %c0_19] : memref<8x1xf32, #tpu.memory_space<vmem>>, vector<8x1xf32>
      tpu.vector_store %arg11[%c0_18, %c0_19], %21 {strides = array<i32>} : memref<8x1xf32, #tpu.memory_space<vmem>>, vector<8x1xf32>,
    } else {
    }
    %c0 = arith.constant 0 : index
    %c0_1 = arith.constant 0 : index
    %3 = vector.load %arg2[%c0, %c0_1] : memref<8x128xbf16, #tpu.memory_space<vmem>>, vector<8x128xbf16>
    %4 = arith.extf %3 : vector<8x128xbf16> to vector<8x128xf32>
    %c0_2 = arith.constant 0 : index
    %c0_3 = arith.constant 0 : index
    %5 = vector.load %arg11[%c0_2, %c0_3] : memref<8x1xf32, #tpu.memory_space<vmem>>, vector<8x1xf32>
    %6 = arith.mulf %4, %4 : vector<8x128xf32>
    %cst = arith.constant dense<0.000000e+00> : vector<8xf32>
    %7 = vector.multi_reduction <add>, %6, %cst [1] : vector<8x128xf32> to vector<8xf32>
    %8 = vector.shape_cast %7 : vector<8xf32> to vector<8x1xf32>
    %9 = arith.addf %5, %8 : vector<8x1xf32>
    %c0_4 = arith.constant 0 : index
    %c0_5 = arith.constant 0 : index
    %10 = vector.load %arg11[%c0_4, %c0_5] : memref<8x1xf32, #tpu.memory_space<vmem>>, vector<8x1xf32>
    tpu.vector_store %arg11[%c0_4, %c0_5], %9 {strides = array<i32>} : memref<8x1xf32, #tpu.memory_space<vmem>>, vector<8x1xf32>,
    %c0_6 = arith.constant 0 : index
    %c0_7 = arith.constant 0 : index
    %11 = vector.load %arg10[%c0_6, %c0_7] : memref<8x32xf32, #tpu.memory_space<vmem>>, vector<8x32xf32>
    %c0_8 = arith.constant 0 : index
    %c0_9 = arith.constant 0 : index
    %12 = vector.load %arg3[%c0_8, %c0_9] : memref<128x32xbf16, #tpu.memory_space<vmem>>, vector<128x32xbf16>
    %cst_10 = arith.constant dense<0.000000e+00> : vector<8x32xf32>
    %13 = tpu.matmul %3, %12, %cst_10 {dimension_numbers = #tpu.dot_dimension_numbers<[1], [0], [0], [1], [0, 0, 1, 1], [], []>} : vector<8x128xbf16>, vector<128x32xbf16>, vector<8x32xf32> -> vector<8x32xf32>
    %14 = arith.addf %11, %13 : vector<8x32xf32>
    %c0_11 = arith.constant 0 : index
    %c0_12 = arith.constant 0 : index
    %15 = vector.load %arg10[%c0_11, %c0_12] : memref<8x32xf32, #tpu.memory_space<vmem>>, vector<8x32xf32>
    tpu.vector_store %arg10[%c0_11, %c0_12], %14 {strides = array<i32>} : memref<8x32xf32, #tpu.memory_space<vmem>>, vector<8x32xf32>,
    %c1_i32 = arith.constant 1 : i32
    %16 = arith.cmpi eq, %arg1, %c1_i32 : i32
    %17 = arith.extui %16 : i1 to i32
    %c0_i32_13 = arith.constant 0 : i32
    %18 = arith.cmpi ne, %17, %c0_i32_13 : i32
    scf.if %18 {
      %c0_14 = arith.constant 0 : index
      %c0_15 = arith.constant 0 : index
      %19 = vector.load %arg7[%c0_14, %c0_15] : memref<16x32xf32, #tpu.memory_space<vmem>>, vector<16x32xf32>
      %20 = vector.extract_strided_slice %19 {offsets = [0, 0], sizes = [1, 32], strides = [1, 1]} : vector<16x32xf32> to vector<1x32xf32>
      %21 = vector.extract_strided_slice %19 {offsets = [1, 0], sizes = [1, 32], strides = [1, 1]} : vector<16x32xf32> to vector<1x32xf32>
      %22 = vector.extract_strided_slice %19 {offsets = [2, 0], sizes = [1, 32], strides = [1, 1]} : vector<16x32xf32> to vector<1x32xf32>
      %23 = vector.extract_strided_slice %19 {offsets = [3, 0], sizes = [1, 32], strides = [1, 1]} : vector<16x32xf32> to vector<1x32xf32>
      %24 = vector.extract_strided_slice %19 {offsets = [4, 0], sizes = [1, 32], strides = [1, 1]} : vector<16x32xf32> to vector<1x32xf32>
      %25 = vector.extract_strided_slice %19 {offsets = [5, 0], sizes = [1, 32], strides = [1, 1]} : vector<16x32xf32> to vector<1x32xf32>
      %26 = vector.extract_strided_slice %19 {offsets = [6, 0], sizes = [1, 32], strides = [1, 1]} : vector<16x32xf32> to vector<1x32xf32>
      %27 = vector.extract_strided_slice %19 {offsets = [7, 0], sizes = [1, 32], strides = [1, 1]} : vector<16x32xf32> to vector<1x32xf32>
      %28 = vector.extract_strided_slice %19 {offsets = [8, 0], sizes = [1, 32], strides = [1, 1]} : vector<16x32xf32> to vector<1x32xf32>
      %c0_16 = arith.constant 0 : index
      %c0_17 = arith.constant 0 : index
      %29 = vector.load %arg11[%c0_16, %c0_17] : memref<8x1xf32, #tpu.memory_space<vmem>>, vector<8x1xf32>
      %cst_18 = arith.constant 1.000000e-24 : f32
      %30 = vector.broadcast %cst_18 : f32 to vector<8x1xf32>
      %31 = arith.maximumf %29, %30 : vector<8x1xf32>
      %32 = math.rsqrt %31 : vector<8x1xf32>
      %c0_19 = arith.constant 0 : index
      %c0_20 = arith.constant 0 : index
      %33 = vector.load %arg10[%c0_19, %c0_20] : memref<8x32xf32, #tpu.memory_space<vmem>>, vector<8x32xf32>
      %34 = vector.broadcast %32 : vector<8x1xf32> to vector<8x32xf32>
      %35 = arith.mulf %33, %34 : vector<8x32xf32>
      %36 = vector.broadcast %20 : vector<1x32xf32> to vector<8x32xf32>
      %37 = arith.addf %35, %36 : vector<8x32xf32>
      %38 = arith.negf %37 : vector<8x32xf32>
      %39 = math.exp %38 : vector<8x32xf32>
      %cst_21 = arith.constant 1.000000e+00 : f32
      %40 = vector.broadcast %cst_21 : f32 to vector<8x32xf32>
      %41 = arith.addf %40, %39 : vector<8x32xf32>
      %42 = arith.divf %40, %41 : vector<8x32xf32>
      %43 = arith.mulf %37, %42 : vector<8x32xf32>
      %cst_22 = arith.constant dense<0.000000e+00> : vector<8xf32>
      %44 = vector.multi_reduction <add>, %43, %cst_22 [1] : vector<8x32xf32> to vector<8xf32>
      %45 = vector.shape_cast %44 : vector<8xf32> to vector<8x1xf32>
      %cst_23 = arith.constant 3.200000e+01 : f32
      %46 = vector.broadcast %cst_23 : f32 to vector<8x1xf32>
      %47 = arith.divf %45, %46 : vector<8x1xf32>
      %48 = vector.broadcast %47 : vector<8x1xf32> to vector<8x32xf32>
      %49 = arith.subf %43, %48 : vector<8x32xf32>
      %50 = vector.broadcast %47 : vector<8x1xf32> to vector<8x32xf32>
      %51 = arith.subf %43, %50 : vector<8x32xf32>
      %52 = arith.mulf %49, %51 : vector<8x32xf32>
      %cst_24 = arith.constant dense<0.000000e+00> : vector<8xf32>
      %53 = vector.multi_reduction <add>, %52, %cst_24 [1] : vector<8x32xf32> to vector<8xf32>
      %54 = vector.shape_cast %53 : vector<8xf32> to vector<8x1xf32>
      %cst_25 = arith.constant 3.200000e+01 : f32
      %55 = vector.broadcast %cst_25 : f32 to vector<8x1xf32>
      %56 = arith.divf %54, %55 : vector<8x1xf32>
      %57 = vector.broadcast %47 : vector<8x1xf32> to vector<8x32xf32>
      %58 = arith.subf %43, %57 : vector<8x32xf32>
      %cst_26 = arith.constant 1.000000e-01 : f32
      %59 = vector.broadcast %cst_26 : f32 to vector<8x1xf32>
      %60 = arith.addf %56, %59 : vector<8x1xf32>
      %61 = math.rsqrt %60 : vector<8x1xf32>
      %62 = vector.broadcast %61 : vector<8x1xf32> to vector<8x32xf32>
      %63 = arith.mulf %58, %62 : vector<8x32xf32>
      %64 = vector.broadcast %21 : vector<1x32xf32> to vector<8x32xf32>
      %65 = arith.mulf %63, %64 : vector<8x32xf32>
      %66 = vector.broadcast %22 : vector<1x32xf32> to vector<8x32xf32>
      %67 = arith.addf %65, %66 : vector<8x32xf32>
      %68 = arith.truncf %67 : vector<8x32xf32> to vector<8x32xbf16>
      %c0_27 = arith.constant 0 : index
      %c0_28 = arith.constant 0 : index
      %69 = vector.load %arg4[%c0_27, %c0_28] : memref<32x32xbf16, #tpu.memory_space<vmem>>, vector<32x32xbf16>
      %cst_29 = arith.constant dense<0.000000e+00> : vector<8x32xf32>
      %70 = tpu.matmul %68, %69, %cst_29 {dimension_numbers = #tpu.dot_dimension_numbers<[1], [0], [0], [1], [0, 0, 1, 1], [], []>} : vector<8x32xbf16>, vector<32x32xbf16>, vector<8x32xf32> -> vector<8x32xf32>
      %71 = vector.broadcast %23 : vector<1x32xf32> to vector<8x32xf32>
      %72 = arith.addf %70, %71 : vector<8x32xf32>
      %73 = arith.addf %72, %67 : vector<8x32xf32>
      %74 = arith.negf %73 : vector<8x32xf32>
      %75 = math.exp %74 : vector<8x32xf32>
      %cst_30 = arith.constant 1.000000e+00 : f32
      %76 = vector.broadcast %cst_30 : f32 to vector<8x32xf32>
      %77 = arith.addf %76, %75 : vector<8x32xf32>
      %78 = arith.divf %76, %77 : vector<8x32xf32>
      %79 = arith.mulf %73, %78 : vector<8x32xf32>
      %cst_31 = arith.constant dense<0.000000e+00> : vector<8xf32>
      %80 = vector.multi_reduction <add>, %79, %cst_31 [1] : vector<8x32xf32> to vector<8xf32>
      %81 = vector.shape_cast %80 : vector<8xf32> to vector<8x1xf32>
      %cst_32 = arith.constant 3.200000e+01 : f32
      %82 = vector.broadcast %cst_32 : f32 to vector<8x1xf32>
      %83 = arith.divf %81, %82 : vector<8x1xf32>
      %84 = vector.broadcast %83 : vector<8x1xf32> to vector<8x32xf32>
      %85 = arith.subf %79, %84 : vector<8x32xf32>
      %86 = vector.broadcast %83 : vector<8x1xf32> to vector<8x32xf32>
      %87 = arith.subf %79, %86 : vector<8x32xf32>
      %88 = arith.mulf %85, %87 : vector<8x32xf32>
      %cst_33 = arith.constant dense<0.000000e+00> : vector<8xf32>
      %89 = vector.multi_reduction <add>, %88, %cst_33 [1] : vector<8x32xf32> to vector<8xf32>
      %90 = vector.shape_cast %89 : vector<8xf32> to vector<8x1xf32>
      %cst_34 = arith.constant 3.200000e+01 : f32
      %91 = vector.broadcast %cst_34 : f32 to vector<8x1xf32>
      %92 = arith.divf %90, %91 : vector<8x1xf32>
      %93 = vector.broadcast %83 : vector<8x1xf32> to vector<8x32xf32>
      %94 = arith.subf %79, %93 : vector<8x32xf32>
      %cst_35 = arith.constant 1.000000e-01 : f32
      %95 = vector.broadcast %cst_35 : f32 to vector<8x1xf32>
      %96 = arith.addf %92, %95 : vector<8x1xf32>
      %97 = math.rsqrt %96 : vector<8x1xf32>
      %98 = vector.broadcast %97 : vector<8x1xf32> to vector<8x32xf32>
      %99 = arith.mulf %94, %98 : vector<8x32xf32>
      %100 = vector.broadcast %24 : vector<1x32xf32> to vector<8x32xf32>
      %101 = arith.mulf %99, %100 : vector<8x32xf32>
      %102 = vector.broadcast %25 : vector<1x32xf32> to vector<8x32xf32>
      %103 = arith.addf %101, %102 : vector<8x32xf32>
      %104 = arith.truncf %103 : vector<8x32xf32> to vector<8x32xbf16>
      %c0_36 = arith.constant 0 : index
      %c0_37 = arith.constant 0 : index
      %105 = vector.load %arg5[%c0_36, %c0_37] : memref<32x32xbf16, #tpu.memory_space<vmem>>, vector<32x32xbf16>
      %cst_38 = arith.constant dense<0.000000e+00> : vector<8x32xf32>
      %106 = tpu.matmul %104, %105, %cst_38 {dimension_numbers = #tpu.dot_dimension_numbers<[1], [0], [0], [1], [0, 0, 1, 1], [], []>} : vector<8x32xbf16>, vector<32x32xbf16>, vector<8x32xf32> -> vector<8x32xf32>
      %107 = vector.broadcast %26 : vector<1x32xf32> to vector<8x32xf32>
      %108 = arith.addf %106, %107 : vector<8x32xf32>
      %109 = arith.addf %108, %67 : vector<8x32xf32>
      %110 = arith.addf %109, %103 : vector<8x32xf32>
      %111 = arith.negf %110 : vector<8x32xf32>
      %112 = math.exp %111 : vector<8x32xf32>
      %cst_39 = arith.constant 1.000000e+00 : f32
      %113 = vector.broadcast %cst_39 : f32 to vector<8x32xf32>
      %114 = arith.addf %113, %112 : vector<8x32xf32>
      %115 = arith.divf %113, %114 : vector<8x32xf32>
      %116 = arith.mulf %110, %115 : vector<8x32xf32>
      %cst_40 = arith.constant dense<0.000000e+00> : vector<8xf32>
      %117 = vector.multi_reduction <add>, %116, %cst_40 [1] : vector<8x32xf32> to vector<8xf32>
      %118 = vector.shape_cast %117 : vector<8xf32> to vector<8x1xf32>
      %cst_41 = arith.constant 3.200000e+01 : f32
      %119 = vector.broadcast %cst_41 : f32 to vector<8x1xf32>
      %120 = arith.divf %118, %119 : vector<8x1xf32>
      %121 = vector.broadcast %120 : vector<8x1xf32> to vector<8x32xf32>
      %122 = arith.subf %116, %121 : vector<8x32xf32>
      %123 = vector.broadcast %120 : vector<8x1xf32> to vector<8x32xf32>
      %124 = arith.subf %116, %123 : vector<8x32xf32>
      %125 = arith.mulf %122, %124 : vector<8x32xf32>
      %cst_42 = arith.constant dense<0.000000e+00> : vector<8xf32>
      %126 = vector.multi_reduction <add>, %125, %cst_42 [1] : vector<8x32xf32> to vector<8xf32>
      %127 = vector.shape_cast %126 : vector<8xf32> to vector<8x1xf32>
      %cst_43 = arith.constant 3.200000e+01 : f32
      %128 = vector.broadcast %cst_43 : f32 to vector<8x1xf32>
      %129 = arith.divf %127, %128 : vector<8x1xf32>
      %130 = vector.broadcast %120 : vector<8x1xf32> to vector<8x32xf32>
      %131 = arith.subf %116, %130 : vector<8x32xf32>
      %cst_44 = arith.constant 1.000000e-01 : f32
      %132 = vector.broadcast %cst_44 : f32 to vector<8x1xf32>
      %133 = arith.addf %129, %132 : vector<8x1xf32>
      %134 = math.rsqrt %133 : vector<8x1xf32>
      %135 = vector.broadcast %134 : vector<8x1xf32> to vector<8x32xf32>
      %136 = arith.mulf %131, %135 : vector<8x32xf32>
      %137 = vector.broadcast %27 : vector<1x32xf32> to vector<8x32xf32>
      %138 = arith.mulf %136, %137 : vector<8x32xf32>
      %139 = vector.broadcast %28 : vector<1x32xf32> to vector<8x32xf32>
      %140 = arith.addf %138, %139 : vector<8x32xf32>
      %141 = arith.truncf %140 : vector<8x32xf32> to vector<8x32xbf16>
      %c0_45 = arith.constant 0 : index
      %c0_46 = arith.constant 0 : index
      %142 = vector.load %arg6[%c0_45, %c0_46] : memref<32x256xbf16, #tpu.memory_space<vmem>>, vector<32x256xbf16>
      %cst_47 = arith.constant dense<0.000000e+00> : vector<8x256xf32>
      %143 = tpu.matmul %141, %142, %cst_47 {dimension_numbers = #tpu.dot_dimension_numbers<[1], [0], [0], [1], [0, 0, 1, 1], [], []>} : vector<8x32xbf16>, vector<32x256xbf16>, vector<8x256xf32> -> vector<8x256xf32>
      %c0_48 = arith.constant 0 : index
      %c0_49 = arith.constant 0 : index
      %144 = vector.load %arg8[%c0_48, %c0_49] : memref<1x256xf32, #tpu.memory_space<vmem>>, vector<1x256xf32>
      %145 = vector.broadcast %144 : vector<1x256xf32> to vector<8x256xf32>
      %146 = arith.addf %143, %145 : vector<8x256xf32>
      %c0_50 = arith.constant 0 : index
      %c0_51 = arith.constant 0 : index
      %147 = vector.load %arg9[%c0_50, %c0_51] : memref<8x256xf32, #tpu.memory_space<vmem>>, vector<8x256xf32>
      tpu.vector_store %arg9[%c0_50, %c0_51], %146 {strides = array<i32>} : memref<8x256xf32, #tpu.memory_space<vmem>>, vector<8x256xf32>,
    } else {
    }
    return
  }
  func.func @transform_0(%arg0: i32, %arg1: i32) -> (i32, i32) {
    %c0_i32 = arith.constant 0 : i32
    return %arg0, %arg1 : i32, i32
  }
  func.func @transform_1(%arg0: i32, %arg1: i32) -> (i32, i32) {
    %c0_i32 = arith.constant 0 : i32
    %c0_i32_0 = arith.constant 0 : i32
    return %arg1, %c0_i32 : i32, i32
  }
  func.func @transform_2(%arg0: i32, %arg1: i32) -> (i32, i32) {
    %c0_i32 = arith.constant 0 : i32
    %c0_i32_0 = arith.constant 0 : i32
    %c0_i32_1 = arith.constant 0 : i32
    return %c0_i32, %c0_i32_0 : i32, i32
  }
  func.func @transform_3(%arg0: i32, %arg1: i32) -> (i32, i32) {
    %c0_i32 = arith.constant 0 : i32
    %c0_i32_0 = arith.constant 0 : i32
    %c0_i32_1 = arith.constant 0 : i32
    return %c0_i32, %c0_i32_0 : i32, i32
  }
  func.func @transform_4(%arg0: i32, %arg1: i32) -> (i32, i32) {
    %c0_i32 = arith.constant 0 : i32
    %c0_i32_0 = arith.constant 0 : i32
    %c0_i32_1 = arith.constant 0 : i32
    return %c0_i32, %c0_i32_0 : i32, i32
  }
  func.func @transform_5(%arg0: i32, %arg1: i32) -> (i32, i32) {
    %c0_i32 = arith.constant 0 : i32
    %c0_i32_0 = arith.constant 0 : i32
    %c0_i32_1 = arith.constant 0 : i32
    return %c0_i32, %c0_i32_0 : i32, i32
  }
  func.func @transform_6(%arg0: i32, %arg1: i32) -> (i32, i32) {
    %c0_i32 = arith.constant 0 : i32
    %c0_i32_0 = arith.constant 0 : i32
    %c0_i32_1 = arith.constant 0 : i32
    return %c0_i32, %c0_i32_0 : i32, i32
  }
  func.func @transform_7(%arg0: i32, %arg1: i32) -> (i32, i32) {
    %c0_i32 = arith.constant 0 : i32
    %c0_i32_0 = arith.constant 0 : i32
    return %arg0, %c0_i32 : i32, i32
  }
}

module attributes {stable_mosaic.version = 11 : i64} {
  func.func @encoder_kernel(%arg0: i32, %arg1: i32, %arg2: memref<8x128xbf16, #tpu.memory_space<vmem>>, %arg3: memref<128x32xbf16, #tpu.memory_space<vmem>>, %arg4: memref<32x32xbf16, #tpu.memory_space<vmem>>, %arg5: memref<32x32xbf16, #tpu.memory_space<vmem>>, %arg6: memref<32x256xbf16, #tpu.memory_space<vmem>>, %arg7: memref<16x32xf32, #tpu.memory_space<vmem>>, %arg8: memref<1x256xf32, #tpu.memory_space<vmem>>, %arg9: memref<8x256xf32, #tpu.memory_space<vmem>>, %arg10: memref<8x32xf32, #tpu.memory_space<vmem>>, %arg11: memref<8x1xf32, #tpu.memory_space<vmem>>) attributes {dimension_semantics = [#tpu.dimension_semantics<parallel>, #tpu.dimension_semantics<arbitrary>], iteration_bounds = array<i64: 2, 2>, scalar_prefetch = 0 : i64, scratch_operands = 2 : i64, tpu.core_type = #tpu.core_type<tc>, window_params = [{transform_indices = @transform_0, window_bounds = array<i64: 8, 128>}, {transform_indices = @transform_1, window_bounds = array<i64: 128, 32>}, {pipeline_mode = #tpu.pipeline_mode<synchronous>, transform_indices = @transform_2, window_bounds = array<i64: 32, 32>}, {pipeline_mode = #tpu.pipeline_mode<synchronous>, transform_indices = @transform_3, window_bounds = array<i64: 32, 32>}, {pipeline_mode = #tpu.pipeline_mode<synchronous>, transform_indices = @transform_4, window_bounds = array<i64: 32, 256>}, {pipeline_mode = #tpu.pipeline_mode<synchronous>, transform_indices = @transform_5, window_bounds = array<i64: 16, 32>}, {pipeline_mode = #tpu.pipeline_mode<synchronous>, transform_indices = @transform_6, window_bounds = array<i64: 1, 256>}, {transform_indices = @transform_7, window_bounds = array<i64: 8, 256>}]} {
    %c0_i32 = arith.constant 0 : i32
    %0 = arith.cmpi eq, %arg1, %c0_i32 : i32
    %1 = arith.extui %0 : i1 to i32
    %c0_i32_0 = arith.constant 0 : i32
    %2 = arith.cmpi ne, %1, %c0_i32_0 : i32
    scf.if %2 {
      %cst_14 = arith.constant 0.000000e+00 : f32
      %19 = vector.broadcast %cst_14 : f32 to vector<8x32xf32>
      %c0_15 = arith.constant 0 : index
      %c0_16 = arith.constant 0 : index
      %20 = vector.load %arg10[%c0_15, %c0_16] : memref<8x32xf32, #tpu.memory_space<vmem>>, vector<8x32xf32>
      tpu.vector_store %arg10[%c0_15, %c0_16], %19 {strides = array<i32>} : memref<8x32xf32, #tpu.memory_space<vmem>>, vector<8x32xf32>,
      %cst_17 = arith.constant 0.000000e+00 : f32
      %21 = vector.broadcast %cst_17 : f32 to vector<8x1xf32>
      %c0_18 = arith.constant 0 : index
      %c0_19 = arith.constant 0 : index
      %22 = vector.load %arg11[%c0_18, %c0_19] : memref<8x1xf32, #tpu.memory_space<vmem>>, vector<8x1xf32>
      tpu.vector_store %arg11[%c0_18, %c0_19], %21 {strides = array<i32>} : memref<8x1xf32, #tpu.memory_space<vmem>>, vector<8x1xf32>,
    } else {
    }
    %c0 = arith.constant 0 : index
    %c0_1 = arith.constant 0 : index
    %3 = vector.load %arg2[%c0, %c0_1] : memref<8x128xbf16, #tpu.memory_space<vmem>>, vector<8x128xbf16>
    %4 = arith.extf %3 : vector<8x128xbf16> to vector<8x128xf32>
    %c0_2 = arith.constant 0 : index
    %c0_3 = arith.constant 0 : index
    %5 = vector.load %arg11[%c0_2, %c0_3] : memref<8x1xf32, #tpu.memory_space<vmem>>, vector<8x1xf32>
    %6 = arith.mulf %4, %4 : vector<8x128xf32>
    %cst = arith.constant dense<0.000000e+00> : vector<8xf32>
    %7 = vector.multi_reduction <add>, %6, %cst [1] : vector<8x128xf32> to vector<8xf32>
    %8 = vector.shape_cast %7 : vector<8xf32> to vector<8x1xf32>
    %9 = arith.addf %5, %8 : vector<8x1xf32>
    %c0_4 = arith.constant 0 : index
    %c0_5 = arith.constant 0 : index
    %10 = vector.load %arg11[%c0_4, %c0_5] : memref<8x1xf32, #tpu.memory_space<vmem>>, vector<8x1xf32>
    tpu.vector_store %arg11[%c0_4, %c0_5], %9 {strides = array<i32>} : memref<8x1xf32, #tpu.memory_space<vmem>>, vector<8x1xf32>,
    %c0_6 = arith.constant 0 : index
    %c0_7 = arith.constant 0 : index
    %11 = vector.load %arg10[%c0_6, %c0_7] : memref<8x32xf32, #tpu.memory_space<vmem>>, vector<8x32xf32>
    %c0_8 = arith.constant 0 : index
    %c0_9 = arith.constant 0 : index
    %12 = vector.load %arg3[%c0_8, %c0_9] : memref<128x32xbf16, #tpu.memory_space<vmem>>, vector<128x32xbf16>
    %cst_10 = arith.constant dense<0.000000e+00> : vector<8x32xf32>
    %13 = tpu.matmul %3, %12, %cst_10 {dimension_numbers = #tpu.dot_dimension_numbers<[1], [0], [0], [1], [0, 0, 1, 1], [], []>} : vector<8x128xbf16>, vector<128x32xbf16>, vector<8x32xf32> -> vector<8x32xf32>
    %14 = arith.addf %11, %13 : vector<8x32xf32>
    %c0_11 = arith.constant 0 : index
    %c0_12 = arith.constant 0 : index
    %15 = vector.load %arg10[%c0_11, %c0_12] : memref<8x32xf32, #tpu.memory_space<vmem>>, vector<8x32xf32>
    tpu.vector_store %arg10[%c0_11, %c0_12], %14 {strides = array<i32>} : memref<8x32xf32, #tpu.memory_space<vmem>>, vector<8x32xf32>,
    %c1_i32 = arith.constant 1 : i32
    %16 = arith.cmpi eq, %arg1, %c1_i32 : i32
    %17 = arith.extui %16 : i1 to i32
    %c0_i32_13 = arith.constant 0 : i32
    %18 = arith.cmpi ne, %17, %c0_i32_13 : i32
    scf.if %18 {
      %c0_14 = arith.constant 0 : index
      %c0_15 = arith.constant 0 : index
      %19 = vector.load %arg7[%c0_14, %c0_15] : memref<16x32xf32, #tpu.memory_space<vmem>>, vector<16x32xf32>
      %20 = vector.extract_strided_slice %19 {offsets = [0, 0], sizes = [1, 32], strides = [1, 1]} : vector<16x32xf32> to vector<1x32xf32>
      %21 = vector.extract_strided_slice %19 {offsets = [1, 0], sizes = [1, 32], strides = [1, 1]} : vector<16x32xf32> to vector<1x32xf32>
      %22 = vector.extract_strided_slice %19 {offsets = [2, 0], sizes = [1, 32], strides = [1, 1]} : vector<16x32xf32> to vector<1x32xf32>
      %23 = vector.extract_strided_slice %19 {offsets = [3, 0], sizes = [1, 32], strides = [1, 1]} : vector<16x32xf32> to vector<1x32xf32>
      %24 = vector.extract_strided_slice %19 {offsets = [4, 0], sizes = [1, 32], strides = [1, 1]} : vector<16x32xf32> to vector<1x32xf32>
      %25 = vector.extract_strided_slice %19 {offsets = [5, 0], sizes = [1, 32], strides = [1, 1]} : vector<16x32xf32> to vector<1x32xf32>
      %26 = vector.extract_strided_slice %19 {offsets = [6, 0], sizes = [1, 32], strides = [1, 1]} : vector<16x32xf32> to vector<1x32xf32>
      %27 = vector.extract_strided_slice %19 {offsets = [7, 0], sizes = [1, 32], strides = [1, 1]} : vector<16x32xf32> to vector<1x32xf32>
      %28 = vector.extract_strided_slice %19 {offsets = [8, 0], sizes = [1, 32], strides = [1, 1]} : vector<16x32xf32> to vector<1x32xf32>
      %c0_16 = arith.constant 0 : index
      %c0_17 = arith.constant 0 : index
      %29 = vector.load %arg11[%c0_16, %c0_17] : memref<8x1xf32, #tpu.memory_space<vmem>>, vector<8x1xf32>
      %cst_18 = arith.constant 1.000000e-24 : f32
      %30 = vector.broadcast %cst_18 : f32 to vector<8x1xf32>
      %31 = arith.maximumf %29, %30 : vector<8x1xf32>
      %32 = math.rsqrt %31 : vector<8x1xf32>
      %c0_19 = arith.constant 0 : index
      %c0_20 = arith.constant 0 : index
      %33 = vector.load %arg10[%c0_19, %c0_20] : memref<8x32xf32, #tpu.memory_space<vmem>>, vector<8x32xf32>
      %34 = vector.broadcast %32 : vector<8x1xf32> to vector<8x32xf32>
      %35 = arith.mulf %33, %34 : vector<8x32xf32>
      %36 = vector.broadcast %20 : vector<1x32xf32> to vector<8x32xf32>
      %37 = arith.addf %35, %36 : vector<8x32xf32>
      %38 = arith.negf %37 : vector<8x32xf32>
      %39 = math.exp %38 : vector<8x32xf32>
      %cst_21 = arith.constant 1.000000e+00 : f32
      %40 = vector.broadcast %cst_21 : f32 to vector<8x32xf32>
      %41 = arith.addf %40, %39 : vector<8x32xf32>
      %42 = arith.divf %40, %41 : vector<8x32xf32>
      %43 = arith.mulf %37, %42 : vector<8x32xf32>
      %cst_22 = arith.constant dense<0.000000e+00> : vector<8xf32>
      %44 = vector.multi_reduction <add>, %43, %cst_22 [1] : vector<8x32xf32> to vector<8xf32>
      %45 = vector.shape_cast %44 : vector<8xf32> to vector<8x1xf32>
      %cst_23 = arith.constant 3.200000e+01 : f32
      %46 = vector.broadcast %cst_23 : f32 to vector<8x1xf32>
      %47 = arith.divf %45, %46 : vector<8x1xf32>
      %48 = vector.broadcast %47 : vector<8x1xf32> to vector<8x32xf32>
      %49 = arith.subf %43, %48 : vector<8x32xf32>
      %50 = vector.broadcast %47 : vector<8x1xf32> to vector<8x32xf32>
      %51 = arith.subf %43, %50 : vector<8x32xf32>
      %52 = arith.mulf %49, %51 : vector<8x32xf32>
      %cst_24 = arith.constant dense<0.000000e+00> : vector<8xf32>
      %53 = vector.multi_reduction <add>, %52, %cst_24 [1] : vector<8x32xf32> to vector<8xf32>
      %54 = vector.shape_cast %53 : vector<8xf32> to vector<8x1xf32>
      %cst_25 = arith.constant 3.200000e+01 : f32
      %55 = vector.broadcast %cst_25 : f32 to vector<8x1xf32>
      %56 = arith.divf %54, %55 : vector<8x1xf32>
      %57 = vector.broadcast %47 : vector<8x1xf32> to vector<8x32xf32>
      %58 = arith.subf %43, %57 : vector<8x32xf32>
      %cst_26 = arith.constant 1.000000e-01 : f32
      %59 = vector.broadcast %cst_26 : f32 to vector<8x1xf32>
      %60 = arith.addf %56, %59 : vector<8x1xf32>
      %61 = math.rsqrt %60 : vector<8x1xf32>
      %62 = vector.broadcast %61 : vector<8x1xf32> to vector<8x32xf32>
      %63 = arith.mulf %58, %62 : vector<8x32xf32>
      %64 = vector.broadcast %21 : vector<1x32xf32> to vector<8x32xf32>
      %65 = arith.mulf %63, %64 : vector<8x32xf32>
      %66 = vector.broadcast %22 : vector<1x32xf32> to vector<8x32xf32>
      %67 = arith.addf %65, %66 : vector<8x32xf32>
      %68 = arith.truncf %67 : vector<8x32xf32> to vector<8x32xbf16>
      %c0_27 = arith.constant 0 : index
      %c0_28 = arith.constant 0 : index
      %69 = vector.load %arg4[%c0_27, %c0_28] : memref<32x32xbf16, #tpu.memory_space<vmem>>, vector<32x32xbf16>
      %cst_29 = arith.constant dense<0.000000e+00> : vector<8x32xf32>
      %70 = tpu.matmul %68, %69, %cst_29 {dimension_numbers = #tpu.dot_dimension_numbers<[1], [0], [0], [1], [0, 0, 1, 1], [], []>} : vector<8x32xbf16>, vector<32x32xbf16>, vector<8x32xf32> -> vector<8x32xf32>
      %71 = vector.broadcast %23 : vector<1x32xf32> to vector<8x32xf32>
      %72 = arith.addf %70, %71 : vector<8x32xf32>
      %73 = arith.addf %72, %67 : vector<8x32xf32>
      %74 = arith.negf %73 : vector<8x32xf32>
      %75 = math.exp %74 : vector<8x32xf32>
      %cst_30 = arith.constant 1.000000e+00 : f32
      %76 = vector.broadcast %cst_30 : f32 to vector<8x32xf32>
      %77 = arith.addf %76, %75 : vector<8x32xf32>
      %78 = arith.divf %76, %77 : vector<8x32xf32>
      %79 = arith.mulf %73, %78 : vector<8x32xf32>
      %cst_31 = arith.constant dense<0.000000e+00> : vector<8xf32>
      %80 = vector.multi_reduction <add>, %79, %cst_31 [1] : vector<8x32xf32> to vector<8xf32>
      %81 = vector.shape_cast %80 : vector<8xf32> to vector<8x1xf32>
      %cst_32 = arith.constant 3.200000e+01 : f32
      %82 = vector.broadcast %cst_32 : f32 to vector<8x1xf32>
      %83 = arith.divf %81, %82 : vector<8x1xf32>
      %84 = vector.broadcast %83 : vector<8x1xf32> to vector<8x32xf32>
      %85 = arith.subf %79, %84 : vector<8x32xf32>
      %86 = vector.broadcast %83 : vector<8x1xf32> to vector<8x32xf32>
      %87 = arith.subf %79, %86 : vector<8x32xf32>
      %88 = arith.mulf %85, %87 : vector<8x32xf32>
      %cst_33 = arith.constant dense<0.000000e+00> : vector<8xf32>
      %89 = vector.multi_reduction <add>, %88, %cst_33 [1] : vector<8x32xf32> to vector<8xf32>
      %90 = vector.shape_cast %89 : vector<8xf32> to vector<8x1xf32>
      %cst_34 = arith.constant 3.200000e+01 : f32
      %91 = vector.broadcast %cst_34 : f32 to vector<8x1xf32>
      %92 = arith.divf %90, %91 : vector<8x1xf32>
      %93 = vector.broadcast %83 : vector<8x1xf32> to vector<8x32xf32>
      %94 = arith.subf %79, %93 : vector<8x32xf32>
      %cst_35 = arith.constant 1.000000e-01 : f32
      %95 = vector.broadcast %cst_35 : f32 to vector<8x1xf32>
      %96 = arith.addf %92, %95 : vector<8x1xf32>
      %97 = math.rsqrt %96 : vector<8x1xf32>
      %98 = vector.broadcast %97 : vector<8x1xf32> to vector<8x32xf32>
      %99 = arith.mulf %94, %98 : vector<8x32xf32>
      %100 = vector.broadcast %24 : vector<1x32xf32> to vector<8x32xf32>
      %101 = arith.mulf %99, %100 : vector<8x32xf32>
      %102 = vector.broadcast %25 : vector<1x32xf32> to vector<8x32xf32>
      %103 = arith.addf %101, %102 : vector<8x32xf32>
      %104 = arith.truncf %103 : vector<8x32xf32> to vector<8x32xbf16>
      %c0_36 = arith.constant 0 : index
      %c0_37 = arith.constant 0 : index
      %105 = vector.load %arg5[%c0_36, %c0_37] : memref<32x32xbf16, #tpu.memory_space<vmem>>, vector<32x32xbf16>
      %cst_38 = arith.constant dense<0.000000e+00> : vector<8x32xf32>
      %106 = tpu.matmul %104, %105, %cst_38 {dimension_numbers = #tpu.dot_dimension_numbers<[1], [0], [0], [1], [0, 0, 1, 1], [], []>} : vector<8x32xbf16>, vector<32x32xbf16>, vector<8x32xf32> -> vector<8x32xf32>
      %107 = vector.broadcast %26 : vector<1x32xf32> to vector<8x32xf32>
      %108 = arith.addf %106, %107 : vector<8x32xf32>
      %109 = arith.addf %108, %67 : vector<8x32xf32>
      %110 = arith.addf %109, %103 : vector<8x32xf32>
      %111 = arith.negf %110 : vector<8x32xf32>
      %112 = math.exp %111 : vector<8x32xf32>
      %cst_39 = arith.constant 1.000000e+00 : f32
      %113 = vector.broadcast %cst_39 : f32 to vector<8x32xf32>
      %114 = arith.addf %113, %112 : vector<8x32xf32>
      %115 = arith.divf %113, %114 : vector<8x32xf32>
      %116 = arith.mulf %110, %115 : vector<8x32xf32>
      %cst_40 = arith.constant dense<0.000000e+00> : vector<8xf32>
      %117 = vector.multi_reduction <add>, %116, %cst_40 [1] : vector<8x32xf32> to vector<8xf32>
      %118 = vector.shape_cast %117 : vector<8xf32> to vector<8x1xf32>
      %cst_41 = arith.constant 3.200000e+01 : f32
      %119 = vector.broadcast %cst_41 : f32 to vector<8x1xf32>
      %120 = arith.divf %118, %119 : vector<8x1xf32>
      %121 = vector.broadcast %120 : vector<8x1xf32> to vector<8x32xf32>
      %122 = arith.subf %116, %121 : vector<8x32xf32>
      %123 = vector.broadcast %120 : vector<8x1xf32> to vector<8x32xf32>
      %124 = arith.subf %116, %123 : vector<8x32xf32>
      %125 = arith.mulf %122, %124 : vector<8x32xf32>
      %cst_42 = arith.constant dense<0.000000e+00> : vector<8xf32>
      %126 = vector.multi_reduction <add>, %125, %cst_42 [1] : vector<8x32xf32> to vector<8xf32>
      %127 = vector.shape_cast %126 : vector<8xf32> to vector<8x1xf32>
      %cst_43 = arith.constant 3.200000e+01 : f32
      %128 = vector.broadcast %cst_43 : f32 to vector<8x1xf32>
      %129 = arith.divf %127, %128 : vector<8x1xf32>
      %130 = vector.broadcast %120 : vector<8x1xf32> to vector<8x32xf32>
      %131 = arith.subf %116, %130 : vector<8x32xf32>
      %cst_44 = arith.constant 1.000000e-01 : f32
      %132 = vector.broadcast %cst_44 : f32 to vector<8x1xf32>
      %133 = arith.addf %129, %132 : vector<8x1xf32>
      %134 = math.rsqrt %133 : vector<8x1xf32>
      %135 = vector.broadcast %134 : vector<8x1xf32> to vector<8x32xf32>
      %136 = arith.mulf %131, %135 : vector<8x32xf32>
      %137 = vector.broadcast %27 : vector<1x32xf32> to vector<8x32xf32>
      %138 = arith.mulf %136, %137 : vector<8x32xf32>
      %139 = vector.broadcast %28 : vector<1x32xf32> to vector<8x32xf32>
      %140 = arith.addf %138, %139 : vector<8x32xf32>
      %141 = arith.truncf %140 : vector<8x32xf32> to vector<8x32xbf16>
      %c0_45 = arith.constant 0 : index
      %c0_46 = arith.constant 0 : index
      %142 = vector.load %arg6[%c0_45, %c0_46] : memref<32x256xbf16, #tpu.memory_space<vmem>>, vector<32x256xbf16>
      %cst_47 = arith.constant dense<0.000000e+00> : vector<8x256xf32>
      %143 = tpu.matmul %141, %142, %cst_47 {dimension_numbers = #tpu.dot_dimension_numbers<[1], [0], [0], [1], [0, 0, 1, 1], [], []>} : vector<8x32xbf16>, vector<32x256xbf16>, vector<8x256xf32> -> vector<8x256xf32>
      %c0_48 = arith.constant 0 : index
      %c0_49 = arith.constant 0 : index
      %144 = vector.load %arg8[%c0_48, %c0_49] : memref<1x256xf32, #tpu.memory_space<vmem>>, vector<1x256xf32>
      %145 = vector.broadcast %144 : vector<1x256xf32> to vector<8x256xf32>
      %146 = arith.addf %143, %145 : vector<8x256xf32>
      %c0_50 = arith.constant 0 : index
      %c0_51 = arith.constant 0 : index
      %147 = vector.load %arg9[%c0_50, %c0_51] : memref<8x256xf32, #tpu.memory_space<vmem>>, vector<8x256xf32>
      tpu.vector_store %arg9[%c0_50, %c0_51], %146 {strides = array<i32>} : memref<8x256xf32, #tpu.memory_space<vmem>>, vector<8x256xf32>,
    } else {
    }
    return
  }
  func.func @transform_0(%arg0: i32, %arg1: i32) -> (i32, i32) {
    %c0_i32 = arith.constant 0 : i32
    return %arg0, %arg1 : i32, i32
  }
  func.func @transform_1(%arg0: i32, %arg1: i32) -> (i32, i32) {
    %c0_i32 = arith.constant 0 : i32
    %c0_i32_0 = arith.constant 0 : i32
    return %arg1, %c0_i32 : i32, i32
  }
  func.func @transform_2(%arg0: i32, %arg1: i32) -> (i32, i32) {
    %c0_i32 = arith.constant 0 : i32
    %c0_i32_0 = arith.constant 0 : i32
    %c0_i32_1 = arith.constant 0 : i32
    return %c0_i32, %c0_i32_0 : i32, i32
  }
  func.func @transform_3(%arg0: i32, %arg1: i32) -> (i32, i32) {
    %c0_i32 = arith.constant 0 : i32
    %c0_i32_0 = arith.constant 0 : i32
    %c0_i32_1 = arith.constant 0 : i32
    return %c0_i32, %c0_i32_0 : i32, i32
  }
  func.func @transform_4(%arg0: i32, %arg1: i32) -> (i32, i32) {
    %c0_i32 = arith.constant 0 : i32
    %c0_i32_0 = arith.constant 0 : i32
    %c0_i32_1 = arith.constant 0 : i32
    return %c0_i32, %c0_i32_0 : i32, i32
  }
  func.func @transform_5(%arg0: i32, %arg1: i32) -> (i32, i32) {
    %c0_i32 = arith.constant 0 : i32
    %c0_i32_0 = arith.constant 0 : i32
    %c0_i32_1 = arith.constant 0 : i32
    return %c0_i32, %c0_i32_0 : i32, i32
  }
  func.func @transform_6(%arg0: i32, %arg1: i32) -> (i32, i32) {
    %c0_i32 = arith.constant 0 : i32
    %c0_i32_0 = arith.constant 0 : i32
    %c0_i32_1 = arith.constant 0 : i32
    return %c0_i32, %c0_i32_0 : i32, i32
  }
  func.func @transform_7(%arg0: i32, %arg1: i32) -> (i32, i32) {
    %c0_i32 = arith.constant 0 : i32
    %c0_i32_0 = arith.constant 0 : i32
    return %arg0, %c0_i32 : i32, i32
  }
}

</mosaic_0001>

<llo_original>
// kernel: tpu_custom_call.1
$region0: #{tpu_custom_call.1}
  #allocation0 [shape = 'u32[]', space=smem, size = 0x4, offset = 0x4, fixed_abs, tag = 'smem constant byte address 0x4 - core index']
  #allocation1 [shape = 'u32[144,128]{1,0:T(1,128)}', space=vmem, size = 0x12000, scoped, tag = 'internal scratch']
  #allocation2 [shape = 'f32[8,32]{1,0:T(8,128)}', space=vmem, size = 0x1000, scoped, tag = 'scratch operand']
  #allocation3 [shape = 'f32[8,1]{1,0:T(8,128)}', space=vmem, size = 0x1000, scoped, tag = 'scratch operand']
  %s0 = inlined_call_operand.vmem [shape: bf16[16,256], index: 0, kind: input, shape index: {}]
  %s1 = inlined_call_operand.vmem [shape: bf16[256,32], index: 1, kind: input, shape index: {}]
  %s2 = inlined_call_operand.vmem [shape: bf16[32,32], index: 2, kind: input, shape index: {}]
  %s3 = inlined_call_operand.vmem [shape: bf16[32,32], index: 3, kind: input, shape index: {}]
  %s4 = inlined_call_operand.vmem [shape: bf16[32,256], index: 4, kind: input, shape index: {}]
  %s5 = inlined_call_operand.vmem [shape: f32[16,32], index: 5, kind: input, shape index: {}]
  %s6 = inlined_call_operand.vmem [shape: f32[1,256], index: 6, kind: input, shape index: {}]
  %s7 = inlined_call_operand.hbm [shape: f32[16,256], index: 7, kind: output, shape index: {}]
  %s8 = sld [smem:[#allocation0]]
  $region69: #{tpu_custom_call.1} parent=0
    _
  %s10 = ssub.s32 1, %s8
  %s11 = scalar_select 0, %s10, %s8
  $region1: #{tpu_custom_call.1} parent=0
    #allocation4 [shape = 'u8[16384]{0}', space=vmem, size = 0x4000, scoped, tag = 'output window, operand 0']
    #allocation5 [shape = 's32[2]{0}', space=sflag, size = 0x8, scoped, tag = 'scoped memory for tpu_custom_call.1']
    %12 = vsyncpa [#allocation5], 0
    %s13 = scalar_lea.sflag [#allocation5], 1
    %14 = vsyncpa %s13, 0
    loop: start=0, step=1, limit=6
    $region2: #{tpu_custom_call.1} parent=1 // loop_pre_header
      _
    $region3: #{tpu_custom_call.1} parent=1 // loop_header
      %s16 = sphi 0, %s20
      %p17 = scmp.ge.s32.totalorder %s16, 6
      %s23 = sphi 0, %s35
      %s24 = sphi 0, %s31
      %s25 = sphi 0, %s23
      %s26 = sphi 0, %s24
      %s27 = sphi 0, %s25
      %s28 = sphi 0, %s26
      %s40 = sphi 0, %s42
      %s43 = sphi 0, %s40
      %s44 = sphi 0, %s43
      %s60 = sphi 0, %s44
      %s66 = sphi 0, %s68
      %s69 = sphi 0, %s66
      %s70 = sphi 0, %s69
      %s86 = sphi 0, %s70
      %s90 = sphi 0, %s90
      %s92 = sphi 0, %s90
      %s93 = sphi 0, %s92
      %s107 = sphi 0, %s93
      %s111 = sphi 0, %s111
      %s113 = sphi 0, %s111
      %s114 = sphi 0, %s113
      %s128 = sphi 0, %s114
      %s132 = sphi 0, %s132
      %s134 = sphi 0, %s132
      %s135 = sphi 0, %s134
      %s149 = sphi 0, %s135
      %s153 = sphi 0, %s153
      %s155 = sphi 0, %s153
      %s156 = sphi 0, %s155
      %s170 = sphi 0, %s156
      %s174 = sphi 0, %s174
      %s176 = sphi 0, %s174
      %s177 = sphi 0, %s176
      %s191 = sphi 0, %s177
      %s197 = sphi 0, %s199
      %s200 = sphi 0, %s197
      %s201 = sphi 0, %s200
      %s217 = sphi 0, %s201
    $region4: #{tpu_custom_call.1} parent=1 // loop_header_branch
      %19 = sbr.rel (%p17) target = $region8
    $region5: #{tpu_custom_call.1} parent=1 // loop_body
      %s21 = ssub.s32 %s16, 1
      %s22 = ssub.s32 %s16, 2
      %s29 = sadd.s32 1, %s24
      %p30 = scmp.ge.s32.totalorder %s29, 2
      %s31 = scalar_select %p30, 0, %s29
      %s32 = sadd.s32 1, %s23
      %s33 = scalar_select %p30, %s32, %s23
      %p34 = scmp.ge.s32.totalorder %s33, 2
      %s35 = scalar_select %p34, 0, %s33
      %s36 = ssub.s32 %s23, %s35
      %s37 = ssub.s32 %s24, %s31
      %s38 = sor.u32 %s36, %s37
      %p39 = scmp.eq.s32.totalorder %s38, 0
      %s41 = sadd.s32 %s40, 1
      %s42 = scalar_select %p39, %s40, %s41
      %p45 = pneg %p39
      %p46 = scmp.eq.s32.totalorder %s16, 3
      %p47 = por %p45, %p46
      %p48 = scmp.ne.s32.totalorder %s40, %s43
      %p49 = scmp.eq.s32.totalorder %s16, 0
      %p50 = por %p48, %p49
      %p51 = scmp.ne.s32.totalorder %s40, %s43
      %p52 = scmp.eq.s32.totalorder %s21, 3
      %p53 = por %p51, %p52
      %p54 = scmp.ne.s32.totalorder %s43, %s44
      %p55 = scmp.eq.s32.totalorder %s21, 0
      %p56 = por %p54, %p55
      %p57 = scmp.ne.s32.totalorder %s43, %s44
      %p58 = scmp.eq.s32.totalorder %s22, 3
      %p59 = por %p57, %p58
      %p61 = scmp.ne.s32.totalorder %s44, %s60
      %p62 = scmp.eq.s32.totalorder %s22, 0
      %p63 = por %p61, %p62
      %s64 = ssub.s32 %s24, %s31
      %p65 = scmp.eq.s32.totalorder %s64, 0
      %s67 = sadd.s32 %s66, 1
      %s68 = scalar_select %p65, %s66, %s67
      %p71 = pneg %p65
      %p72 = scmp.eq.s32.totalorder %s16, 3
      %p73 = por %p71, %p72
      %p74 = scmp.ne.s32.totalorder %s66, %s69
      %p75 = scmp.eq.s32.totalorder %s16, 0
      %p76 = por %p74, %p75
      %p77 = scmp.ne.s32.totalorder %s66, %s69
      %p78 = scmp.eq.s32.totalorder %s21, 3
      %p79 = por %p77, %p78
      %p80 = scmp.ne.s32.totalorder %s69, %s70
      %p81 = scmp.eq.s32.totalorder %s21, 0
      %p82 = por %p80, %p81
      %p83 = scmp.ne.s32.totalorder %s69, %s70
      %p84 = scmp.eq.s32.totalorder %s22, 3
      %p85 = por %p83, %p84
      %p87 = scmp.ne.s32.totalorder %s70, %s86
      %p88 = scmp.eq.s32.totalorder %s22, 0
      %p89 = por %p87, %p88
      %s91 = sadd.s32 %s90, 1
      %p94 = scmp.eq.s32.totalorder %s16, 3
      %p95 = scmp.ne.s32.totalorder %s90, %s92
      %p96 = scmp.eq.s32.totalorder %s16, 0
      %p97 = por %p95, %p96
      %p98 = scmp.ne.s32.totalorder %s90, %s92
      %p99 = scmp.eq.s32.totalorder %s21, 3
      %p100 = por %p98, %p99
      %p101 = scmp.ne.s32.totalorder %s92, %s93
      %p102 = scmp.eq.s32.totalorder %s21, 0
      %p103 = por %p101, %p102
      %p104 = scmp.ne.s32.totalorder %s92, %s93
      %p105 = scmp.eq.s32.totalorder %s22, 3
      %p106 = por %p104, %p105
      %p108 = scmp.ne.s32.totalorder %s93, %s107
      %p109 = scmp.eq.s32.totalorder %s22, 0
      %p110 = por %p108, %p109
      %s112 = sadd.s32 %s111, 1
      %p115 = scmp.eq.s32.totalorder %s16, 3
      %p116 = scmp.ne.s32.totalorder %s111, %s113
      %p117 = scmp.eq.s32.totalorder %s16, 0
      %p118 = por %p116, %p117
      %p119 = scmp.ne.s32.totalorder %s111, %s113
      %p120 = scmp.eq.s32.totalorder %s21, 3
      %p121 = por %p119, %p120
      %p122 = scmp.ne.s32.totalorder %s113, %s114
      %p123 = scmp.eq.s32.totalorder %s21, 0
      %p124 = por %p122, %p123
      %p125 = scmp.ne.s32.totalorder %s113, %s114
      %p126 = scmp.eq.s32.totalorder %s22, 3
      %p127 = por %p125, %p126
      %p129 = scmp.ne.s32.totalorder %s114, %s128
      %p130 = scmp.eq.s32.totalorder %s22, 0
      %p131 = por %p129, %p130
      %s133 = sadd.s32 %s132, 1
      %p136 = scmp.eq.s32.totalorder %s16, 3
      %p137 = scmp.ne.s32.totalorder %s132, %s134
      %p138 = scmp.eq.s32.totalorder %s16, 0
      %p139 = por %p137, %p138
      %p140 = scmp.ne.s32.totalorder %s132, %s134
      %p141 = scmp.eq.s32.totalorder %s21, 3
      %p142 = por %p140, %p141
      %p143 = scmp.ne.s32.totalorder %s134, %s135
      %p144 = scmp.eq.s32.totalorder %s21, 0
      %p145 = por %p143, %p144
      %p146 = scmp.ne.s32.totalorder %s134, %s135
      %p147 = scmp.eq.s32.totalorder %s22, 3
      %p148 = por %p146, %p147
      %p150 = scmp.ne.s32.totalorder %s135, %s149
      %p151 = scmp.eq.s32.totalorder %s22, 0
      %p152 = por %p150, %p151
      %s154 = sadd.s32 %s153, 1
      %p157 = scmp.eq.s32.totalorder %s16, 3
      %p158 = scmp.ne.s32.totalorder %s153, %s155
      %p159 = scmp.eq.s32.totalorder %s16, 0
      %p160 = por %p158, %p159
      %p161 = scmp.ne.s32.totalorder %s153, %s155
      %p162 = scmp.eq.s32.totalorder %s21, 3
      %p163 = por %p161, %p162
      %p164 = scmp.ne.s32.totalorder %s155, %s156
      %p165 = scmp.eq.s32.totalorder %s21, 0
      %p166 = por %p164, %p165
      %p167 = scmp.ne.s32.totalorder %s155, %s156
      %p168 = scmp.eq.s32.totalorder %s22, 3
      %p169 = por %p167, %p168
      %p171 = scmp.ne.s32.totalorder %s156, %s170
      %p172 = scmp.eq.s32.totalorder %s22, 0
      %p173 = por %p171, %p172
      %s175 = sadd.s32 %s174, 1
      %p178 = scmp.eq.s32.totalorder %s16, 3
      %p179 = scmp.ne.s32.totalorder %s174, %s176
      %p180 = scmp.eq.s32.totalorder %s16, 0
      %p181 = por %p179, %p180
      %p182 = scmp.ne.s32.totalorder %s174, %s176
      %p183 = scmp.eq.s32.totalorder %s21, 3
      %p184 = por %p182, %p183
      %p185 = scmp.ne.s32.totalorder %s176, %s177
      %p186 = scmp.eq.s32.totalorder %s21, 0
      %p187 = por %p185, %p186
      %p188 = scmp.ne.s32.totalorder %s176, %s177
      %p189 = scmp.eq.s32.totalorder %s22, 3
      %p190 = por %p188, %p189
      %p192 = scmp.ne.s32.totalorder %s177, %s191
      %p193 = scmp.eq.s32.totalorder %s22, 0
      %p194 = por %p192, %p193
      %s195 = ssub.s32 %s23, %s35
      %p196 = scmp.eq.s32.totalorder %s195, 0
      %s198 = sadd.s32 %s197, 1
      %s199 = scalar_select %p196, %s197, %s198
      %p202 = pneg %p196
      %p203 = scmp.eq.s32.totalorder %s16, 3
      %p204 = por %p202, %p203
      %p205 = scmp.ne.s32.totalorder %s197, %s200
      %p206 = scmp.eq.s32.totalorder %s16, 0
      %p207 = por %p205, %p206
      %p208 = scmp.ne.s32.totalorder %s197, %s200
      %p209 = scmp.eq.s32.totalorder %s21, 3
      %p210 = por %p208, %p209
      %p211 = scmp.ne.s32.totalorder %s200, %s201
      %p212 = scmp.eq.s32.totalorder %s21, 0
      %p213 = por %p211, %p212
      %p214 = scmp.ne.s32.totalorder %s200, %s201
      %p215 = scmp.eq.s32.totalorder %s22, 3
      %p216 = por %p214, %p215
      %p218 = scmp.ne.s32.totalorder %s201, %s217
      %p219 = scmp.eq.s32.totalorder %s22, 0
      %p220 = por %p218, %p219
      %p221 = scmp.le.s32.totalorder 1, %s16
      %p222 = scmp.lt.s32.totalorder %s16, 5
      %p223 = pnand %p221, %p222
      %p224 = pneg %p223
      // Predicated region
      $region9: #{tpu_custom_call.1} parent=5 // pred_check
        _
      $region10: #{tpu_custom_call.1} parent=5 // pred_check_branch
        %226 = sbr.rel (%p223) target = $region12
      $region11: #{tpu_custom_call.1} parent=5 // pred_region
        %s227 = ssub.s32 %s16, 1
        // Predicated region
        $region13: #{tpu_custom_call.1} parent=11 // pred_check
          %p228 = pneg %p103
        $region14: #{tpu_custom_call.1} parent=11 // pred_check_branch
          %230 = sbr.rel (%p228) target = $region16
        $region15: #{tpu_custom_call.1} parent=11 // pred_region
          _
        $region16: #{tpu_custom_call.1} parent=11 // pred_fallthru
          _
        // Predicated region
        $region17: #{tpu_custom_call.1} parent=11 // pred_check
          %p231 = pneg %p124
        $region18: #{tpu_custom_call.1} parent=11 // pred_check_branch
          %233 = sbr.rel (%p231) target = $region20
        $region19: #{tpu_custom_call.1} parent=11 // pred_region
          _
        $region20: #{tpu_custom_call.1} parent=11 // pred_fallthru
          _
        // Predicated region
        $region21: #{tpu_custom_call.1} parent=11 // pred_check
          %p234 = pneg %p145
        $region22: #{tpu_custom_call.1} parent=11 // pred_check_branch
          %236 = sbr.rel (%p234) target = $region24
        $region23: #{tpu_custom_call.1} parent=11 // pred_region
          _
        $region24: #{tpu_custom_call.1} parent=11 // pred_fallthru
          _
        // Predicated region
        $region25: #{tpu_custom_call.1} parent=11 // pred_check
          %p237 = pneg %p166
        $region26: #{tpu_custom_call.1} parent=11 // pred_check_branch
          %239 = sbr.rel (%p237) target = $region28
        $region27: #{tpu_custom_call.1} parent=11 // pred_region
          _
        $region28: #{tpu_custom_call.1} parent=11 // pred_fallthru
          _
        // Predicated region
        $region29: #{tpu_custom_call.1} parent=11 // pred_check
          %p240 = pneg %p187
        $region30: #{tpu_custom_call.1} parent=11 // pred_check_branch
          %242 = sbr.rel (%p240) target = $region32
        $region31: #{tpu_custom_call.1} parent=11 // pred_region
          _
        $region32: #{tpu_custom_call.1} parent=11 // pred_fallthru
          _
      $region12: #{tpu_custom_call.1} parent=5 // pred_fallthru
        _
      %p243 = scmp.lt.s32.totalorder %s16, 4
      // Predicated region
      $region33: #{tpu_custom_call.1} parent=5 // pred_check
        %p244 = pneg %p243
      $region34: #{tpu_custom_call.1} parent=5 // pred_check_branch
        %246 = sbr.rel (%p244) target = $region36
      $region35: #{tpu_custom_call.1} parent=5 // pred_region
        // Predicated region
        $region37: #{tpu_custom_call.1} parent=35 // pred_check
          %p247 = pneg %p50
        $region38: #{tpu_custom_call.1} parent=35 // pred_check_branch
          %249 = sbr.rel (%p247) target = $region40
        $region39: #{tpu_custom_call.1} parent=35 // pred_region
          %p250 = scmp.lt.s32.totalorder %s23, 1
          %s251 = scalar_select %p250, %s23, 1
          %p252 = scmp.lt.s32.totalorder %s24, 1
          %s253 = scalar_select %p252, %s24, 1
          %s254 = smul.addr %s251, 2
          %s255 = sadd.s32 %s253, %s254
          %s256 = smul.addr %s255, 4
          %s257 = scalar_lea.vmem %s0, %s256
        $region40: #{tpu_custom_call.1} parent=35 // pred_fallthru
          _
        // Predicated region
        $region41: #{tpu_custom_call.1} parent=35 // pred_check
          %p258 = pneg %p76
        $region42: #{tpu_custom_call.1} parent=35 // pred_check_branch
          %260 = sbr.rel (%p258) target = $region44
        $region43: #{tpu_custom_call.1} parent=35 // pred_region
          %s261 = smul.u32 16, %s24
          %p262 = scmp.lt.s32.totalorder %s261, 31
          %s263 = scalar_select %p262, %s261, 31
          %s264 = smul.addr %s263, 4
          %s265 = scalar_lea.vmem %s1, %s264
          %s266 = smul.u32 16, %s24
        $region44: #{tpu_custom_call.1} parent=35 // pred_fallthru
          _
      $region36: #{tpu_custom_call.1} parent=5 // pred_fallthru
        _
      %p267 = scmp.le.s32.totalorder 1, %s16
      %p268 = scmp.lt.s32.totalorder %s16, 5
      %p269 = pnand %p267, %p268
      %p270 = pneg %p269
      // Predicated region
      $region45: #{tpu_custom_call.1} parent=5 // pred_check
        _
      $region46: #{tpu_custom_call.1} parent=5 // pred_check_branch
        %272 = sbr.rel (%p269) target = $region48
      $region47: #{tpu_custom_call.1} parent=5 // pred_region
        %s273 = ssub.s32 %s16, 1
        %p274 = scmp.lt.s32.totalorder %s25, 1
        %s275 = scalar_select %p274, %s25, 1
        %p276 = scmp.lt.s32.totalorder %s26, 1
        %s277 = scalar_select %p276, %s26, 1
        %s278 = smul.addr %s275, 2
        %s279 = sadd.s32 %s277, %s278
        %s280 = smul.addr %s279, 4
        %s281 = scalar_lea.vmem %s0, %s280
        %p282 = pneg %p56
        %p283 = pneg %p53
        %s284 = smul.u32 16, %s26
        %p285 = scmp.lt.s32.totalorder %s284, 31
        %s286 = scalar_select %p285, %s284, 31
        %s287 = smul.addr %s286, 4
        %s288 = scalar_lea.vmem %s1, %s287
        %p289 = pneg %p82
        %p290 = pneg %p79
        %p291 = pneg %p103
        %p292 = pneg %p100
        %p293 = pneg %p124
        %p294 = pneg %p121
        %p295 = pneg %p145
        %p296 = pneg %p142
        %p297 = pneg %p166
        %p298 = pneg %p163
        %p299 = pneg %p187
        %p300 = pneg %p184
        %p301 = pneg %p213
        %p302 = pneg %p210
        %s303 = sand.u32 %s200, 1
        %s304 = scalar_lea.sflag [#allocation5], %s303
        %s305 = sand.u32 %s200, 1
        %s306 = smul.addr %s305, 16
        %s307 = scalar_lea.vmem [#allocation4], %s306
        %p308 = scmp.lt.s32.totalorder %s25, 1
        %s309 = scalar_select %p308, %s25, 1
        %p310 = scmp.lt.s32.totalorder %s26, 1
        %s311 = scalar_select %p310, %s26, 1
        %s312 = smul.addr %s309, 2
        %s313 = sadd.s32 %s311, %s312
        %s314 = smul.addr %s313, 4
        %s315 = scalar_lea.vmem %s0, %s314
        %s316 = smul.u32 16, %s26
        %p317 = scmp.lt.s32.totalorder %s316, 31
        %s318 = scalar_select %p317, %s316, 31
        %s319 = smul.addr %s318, 4
        %s320 = scalar_lea.vmem %s1, %s319
        %s321 = smul.u32 16, %s26
        %p323 = scmp.eq.s32.totalorder %s26, 0
        // Predicated region
        $region49: #{tpu_custom_call.1} parent=47 // pred_check
          %p324 = pneg %p323
        $region50: #{tpu_custom_call.1} parent=47 // pred_check_branch
          %326 = sbr.rel (%p324) target = $region52
        $region51: #{tpu_custom_call.1} parent=47 // pred_region
          %vm327 = vcmask 261120
          %328 = vst.msk [vmem:[#allocation2] sm:$0xff] %vm327, 0.0
          %vm329 = vcmask 7168
          %330 = vst.msk [vmem:[#allocation3] sm:$0xff] %vm329, 0.0
        $region52: #{tpu_custom_call.1} parent=47 // pred_fallthru
          _
        %v331 = vld [vmem:[%s315] sm:$0xf]
        %v332 = vunpack.c.l.bf16 %v331
        %v333 = vld [vmem:[#allocation3] sm:$0xff]
        %v334 = vmul.f32 %v332, %v332
        %335 = vadd.xlane.f32.xlu0 %v334
        %v336 = vpop.xlane.xlu0 %335
        %v337 = vadd.f32 %v333, %v336
        %vm338 = vcmask 7168
        %339 = vst.msk [vmem:[#allocation3] sm:$0xff] %vm338, %v337
        %v340 = vld [vmem:[#allocation2] sm:$0xff]
        %v341 = vld [vmem:[%s320] sm:$0xf]
        %v342 = vld [vmem:[%s320 + $0x4] sm:$0xf]
        %v343 = vld [vmem:[%s320 + $0x8] sm:$0xf]
        %v344 = vld [vmem:[%s320 + $0xc] sm:$0xf]
        %v345 = vld [vmem:[%s320 + $0x10] sm:$0xf]
        %v346 = vld [vmem:[%s320 + $0x14] sm:$0xf]
        %v347 = vld [vmem:[%s320 + $0x18] sm:$0xf]
        %v348 = vld [vmem:[%s320 + $0x1c] sm:$0xf]
        %v349 = vld [vmem:[%s320 + $0x20] sm:$0xf]
        %v350 = vld [vmem:[%s320 + $0x24] sm:$0xf]
        %v351 = vld [vmem:[%s320 + $0x28] sm:$0xf]
        %v352 = vld [vmem:[%s320 + $0x2c] sm:$0xf]
        %v353 = vld [vmem:[%s320 + $0x30] sm:$0xf]
        %v354 = vld [vmem:[%s320 + $0x34] sm:$0xf]
        %v355 = vld [vmem:[%s320 + $0x38] sm:$0xf]
        %v356 = vld [vmem:[%s320 + $0x3c] sm:$0xf]
        %v373 = vunpack.c.l.b16 %v341
        %v374 = vunpack.c.l.b16 %v342
        %v375 = vunpack.c.l.b16 %v343
        %v376 = vunpack.c.l.b16 %v344
        %v377 = vunpack.c.l.b16 %v345
        %v378 = vunpack.c.l.b16 %v346
        %v379 = vunpack.c.l.b16 %v347
        %v380 = vunpack.c.l.b16 %v348
        %v381 = vunpack.c.l.b16 %v349
        %v382 = vunpack.c.l.b16 %v350
        %v383 = vunpack.c.l.b16 %v351
        %v384 = vunpack.c.l.b16 %v352
        %v385 = vunpack.c.l.b16 %v353
        %v386 = vunpack.c.l.b16 %v354
        %v387 = vunpack.c.l.b16 %v355
        %v388 = vunpack.c.l.b16 %v356
        %v389 = vpack.c.b16 %v374, %v373
        %v390 = vpack.c.b16 %v376, %v375
        %v391 = vpack.c.b16 %v378, %v377
        %v392 = vpack.c.b16 %v380, %v379
        %v393 = vpack.c.b16 %v382, %v381
        %v394 = vpack.c.b16 %v384, %v383
        %v395 = vpack.c.b16 %v386, %v385
        %v396 = vpack.c.b16 %v388, %v387
        %405 = vmatprep.subr.bf16.mxu0 0
        %406 = vmatpush1.bf16.msra.mxu0 %v396
        %407 = vmatprep.subr.bf16.mxu0 0
        %408 = vmatpush1.bf16.msra.mxu0 %v395
        %409 = vmatprep.subr.bf16.mxu0 0
        %410 = vmatpush1.bf16.msra.mxu0 %v394
        %411 = vmatprep.subr.bf16.mxu0 0
        %412 = vmatpush1.bf16.msra.mxu0 %v393
        %413 = vmatprep.subr.bf16.mxu0 0
        %414 = vmatpush1.bf16.msra.mxu0 %v392
        %415 = vmatprep.subr.bf16.mxu0 0
        %416 = vmatpush1.bf16.msra.mxu0 %v391
        %417 = vmatprep.subr.bf16.mxu0 0
        %418 = vmatpush1.bf16.msra.mxu0 %v390
        %419 = vmatprep.subr.bf16.mxu0 0
        %420 = vmatpush1.bf16.msra.mxu0 %v389
        %421 = vmatprep.subr.bf16.mxu0 0
        %422 = vmatpush2.bf16.msra.mxu0 0
        %423 = vmatprep.subr.bf16.mxu0 0
        %424 = vmatpush2.bf16.msra.mxu0 0
        %425 = vmatprep.subr.bf16.mxu0 0
        %426 = vmatpush2.bf16.msra.mxu0 0
        %427 = vmatprep.subr.bf16.mxu0 0
        %428 = vmatpush2.bf16.msra.mxu0 0
        %429 = vmatprep.subr.bf16.mxu0 0
        %430 = vmatpush2.bf16.msra.mxu0 0
        %431 = vmatprep.subr.bf16.mxu0 0
        %432 = vmatpush2.bf16.msra.mxu0 0
        %433 = vmatprep.subr.bf16.mxu0 0
        %434 = vmatpush2.bf16.msra.mxu0 0
        %435 = vmatprep.subr.bf16.mxu0 0
        %436 = vmatpush2.bf16.msra.mxu0 0
        %437 = vmatprep.mubr.bf16.mxu0 0
        %438 = vmatmul.mubr.bf16.gmra.mxu0 %v331
        %v439 = vpop.f32.mrf.mxu0
        %v440 = vadd.f32 0.0, %v439
        %v441 = vpop.f32.mrf.mxu0
        %v442 = vpop.f32.mrf.mxu0
        %v443 = vpop.f32.mrf.mxu0
        %444 = vdwg.mxu0
        %v445 = vadd.f32 %v340, %v440
        %vm446 = vcmask 261120
        %447 = vst.msk [vmem:[#allocation2] sm:$0xff] %vm446, %v445
        %p448 = scmp.eq.s32.totalorder %s26, 1
        // Predicated region
        $region53: #{tpu_custom_call.1} parent=47 // pred_check
          %p449 = pneg %p448
        $region54: #{tpu_custom_call.1} parent=47 // pred_check_branch
          %451 = sbr.rel (%p449) target = $region56
        $region55: #{tpu_custom_call.1} parent=47 // pred_region
          %v452 = vld [vmem:[%s5] sm:$0xff]
          %v453 = vld [vmem:[%s5 + $0x8] sm:$0xff]
          %v454 = vld [vmem:[#allocation3] sm:$0xff]
          %v455 = vmax.f32 %v454, 1e-24
          %v456 = vrsqrt.pop %v455
          %v457 = vld [vmem:[#allocation2] sm:$0xff]
          %459 = vset.pattern.permute.xlu0 0
          %460 = vperm.xlu0 %459, %v456
          %v461 = vpop.permute.xlu0 %460
          %v463 = vmul.f32 %v457, %v461
          %v464 = vlaneseq
          %v465 = vshrl.u32 %v464, 7
          %v466 = vsub.s32 0, %v465
          %v467 = vrot.slane %v452, %v466
          %v468 = vadd.f32 %v463, %v467
          %v469 = vxor.u32 %v468, 2147483648
          %v470 = vmul.f32 %v469, 1.442695
          %v471 = vpow.pop %v470
          %v472 = vadd.f32 %v471, 1.0
          %v473 = vrcp.pop %v472
          %v474 = vmul.f32 1.0, %v473
          %v475 = vmul.f32 %v468, %v474
          %v476 = vsel %vm446, %v475, 0.0
          %477 = vadd.xlane.f32.xlu0 %v476
          %v478 = vpop.xlane.xlu0 %477
          %v479 = vrcp.pop 32.0
          %v480 = vmul.f32 %v478, %v479
          %v481 = vsub.f32 %v475, %v480
          %v482 = vmul.f32 %v481, %v481
          %v483 = vsel %vm446, %v482, 0.0
          %484 = vadd.xlane.f32.xlu0 %v483
          %v485 = vpop.xlane.xlu0 %484
          %v486 = vmul.f32 %v485, %v479
          %v487 = vadd.f32 %v486, 0.1
          %v488 = vrsqrt.pop %v487
          %v489 = vmul.f32 %v481, %v488
          %v490 = vlaneseq
          %v491 = vshrl.u32 %v490, 7
          %v492 = vsub.s32 1, %v491
          %v493 = vrot.slane %v452, %v492
          %v494 = vmul.f32 %v489, %v493
          %v495 = vlaneseq
          %v496 = vshrl.u32 %v495, 7
          %v497 = vsub.s32 2, %v496
          %v498 = vrot.slane %v452, %v497
          %v499 = vadd.f32 %v494, %v498
          %v500 = vpack.c.bf16 %v499, %v499
          %v501 = vld [vmem:[%s2] sm:$0xf]
          %v502 = vld [vmem:[%s2 + $0x4] sm:$0xf]
          %v503 = vld [vmem:[%s2 + $0x8] sm:$0xf]
          %v504 = vld [vmem:[%s2 + $0xc] sm:$0xf]
          %v505 = vlaneseq
          %v506 = vshrl.u32 %v505, 7
          %v507 = vsub.s32 3, %v506
          %v508 = vrot.slane %v452, %v507
          %v513 = vunpack.c.l.b16 %v501
          %v514 = vunpack.c.l.b16 %v502
          %v515 = vunpack.c.l.b16 %v503
          %v516 = vunpack.c.l.b16 %v504
          %v517 = vpack.c.b16 %v514, %v513
          %v518 = vpack.c.b16 %v516, %v515
          %v522 = vsel %vm446, %v500, 0
          %524 = vmatprep.subr.bf16.mxu0 0
          %525 = vmatpush1.bf16.msra.mxu0 0
          %526 = vmatprep.subr.bf16.mxu0 0
          %527 = vmatpush1.bf16.msra.mxu0 0
          %528 = vmatprep.subr.bf16.mxu0 0
          %529 = vmatpush1.bf16.msra.mxu0 0
          %530 = vmatprep.subr.bf16.mxu0 0
          %531 = vmatpush1.bf16.msra.mxu0 0
          %532 = vmatprep.subr.bf16.mxu0 0
          %533 = vmatpush1.bf16.msra.mxu0 0
          %534 = vmatprep.subr.bf16.mxu0 0
          %535 = vmatpush1.bf16.msra.mxu0 0
          %536 = vmatprep.subr.bf16.mxu0 0
          %537 = vmatpush1.bf16.msra.mxu0 %v518
          %538 = vmatprep.subr.bf16.mxu0 0
          %539 = vmatpush1.bf16.msra.mxu0 %v517
          %540 = vmatprep.subr.bf16.mxu0 0
          %541 = vmatpush2.bf16.msra.mxu0 0
          %542 = vmatprep.subr.bf16.mxu0 0
          %543 = vmatpush2.bf16.msra.mxu0 0
          %544 = vmatprep.subr.bf16.mxu0 0
          %545 = vmatpush2.bf16.msra.mxu0 0
          %546 = vmatprep.subr.bf16.mxu0 0
          %547 = vmatpush2.bf16.msra.mxu0 0
          %548 = vmatprep.subr.bf16.mxu0 0
          %549 = vmatpush2.bf16.msra.mxu0 0
          %550 = vmatprep.subr.bf16.mxu0 0
          %551 = vmatpush2.bf16.msra.mxu0 0
          %552 = vmatprep.subr.bf16.mxu0 0
          %553 = vmatpush2.bf16.msra.mxu0 0
          %554 = vmatprep.subr.bf16.mxu0 0
          %555 = vmatpush2.bf16.msra.mxu0 0
          %556 = vmatprep.mubr.bf16.mxu0 0
          %557 = vmatmul.mubr.bf16.gmra.mxu0 %v522
          %v558 = vpop.f32.mrf.mxu0
          %v559 = vadd.f32 %v508, %v558
          %v560 = vpop.f32.mrf.mxu0
          %v561 = vpop.f32.mrf.mxu0
          %v562 = vpop.f32.mrf.mxu0
          %563 = vdwg.mxu0
          %v564 = vadd.f32 %v559, %v499
          %v565 = vxor.u32 %v564, 2147483648
          %v566 = vmul.f32 %v565, 1.442695
          %v567 = vpow.pop %v566
          %v568 = vadd.f32 %v567, 1.0
          %v569 = vrcp.pop %v568
          %v570 = vmul.f32 1.0, %v569
          %v571 = vmul.f32 %v564, %v570
          %v572 = vsel %vm446, %v571, 0.0
          %573 = vadd.xlane.f32.xlu0 %v572
          %v574 = vpop.xlane.xlu0 %573
          %v575 = vmul.f32 %v574, %v479
          %v576 = vsub.f32 %v571, %v575
          %v577 = vmul.f32 %v576, %v576
          %v578 = vsel %vm446, %v577, 0.0
          %579 = vadd.xlane.f32.xlu0 %v578
          %v580 = vpop.xlane.xlu0 %579
          %v581 = vmul.f32 %v580, %v479
          %v582 = vadd.f32 %v581, 0.1
          %v583 = vrsqrt.pop %v582
          %v584 = vmul.f32 %v576, %v583
          %v585 = vlaneseq
          %v586 = vshrl.u32 %v585, 7
          %v587 = vsub.s32 4, %v586
          %v588 = vrot.slane %v452, %v587
          %v589 = vmul.f32 %v584, %v588
          %v590 = vlaneseq
          %v591 = vshrl.u32 %v590, 7
          %v592 = vsub.s32 5, %v591
          %v593 = vrot.slane %v452, %v592
          %v594 = vadd.f32 %v589, %v593
          %v595 = vpack.c.bf16 %v594, %v594
          %v596 = vld [vmem:[%s3] sm:$0xf]
          %v597 = vld [vmem:[%s3 + $0x4] sm:$0xf]
          %v598 = vld [vmem:[%s3 + $0x8] sm:$0xf]
          %v599 = vld [vmem:[%s3 + $0xc] sm:$0xf]
          %v600 = vlaneseq
          %v601 = vshrl.u32 %v600, 7
          %v602 = vsub.s32 6, %v601
          %v603 = vrot.slane %v452, %v602
          %v608 = vunpack.c.l.b16 %v596
          %v609 = vunpack.c.l.b16 %v597
          %v610 = vunpack.c.l.b16 %v598
          %v611 = vunpack.c.l.b16 %v599
          %v612 = vpack.c.b16 %v609, %v608
          %v613 = vpack.c.b16 %v611, %v610
          %v617 = vsel %vm446, %v595, 0
          %619 = vmatprep.subr.bf16.mxu0 0
          %620 = vmatpush1.bf16.msra.mxu0 0
          %621 = vmatprep.subr.bf16.mxu0 0
          %622 = vmatpush1.bf16.msra.mxu0 0
          %623 = vmatprep.subr.bf16.mxu0 0
          %624 = vmatpush1.bf16.msra.mxu0 0
          %625 = vmatprep.subr.bf16.mxu0 0
          %626 = vmatpush1.bf16.msra.mxu0 0
          %627 = vmatprep.subr.bf16.mxu0 0
          %628 = vmatpush1.bf16.msra.mxu0 0
          %629 = vmatprep.subr.bf16.mxu0 0
          %630 = vmatpush1.bf16.msra.mxu0 0
          %631 = vmatprep.subr.bf16.mxu0 0
          %632 = vmatpush1.bf16.msra.mxu0 %v613
          %633 = vmatprep.subr.bf16.mxu0 0
          %634 = vmatpush1.bf16.msra.mxu0 %v612
          %635 = vmatprep.subr.bf16.mxu0 0
          %636 = vmatpush2.bf16.msra.mxu0 0
          %637 = vmatprep.subr.bf16.mxu0 0
          %638 = vmatpush2.bf16.msra.mxu0 0
          %639 = vmatprep.subr.bf16.mxu0 0
          %640 = vmatpush2.bf16.msra.mxu0 0
          %641 = vmatprep.subr.bf16.mxu0 0
          %642 = vmatpush2.bf16.msra.mxu0 0
          %643 = vmatprep.subr.bf16.mxu0 0
          %644 = vmatpush2.bf16.msra.mxu0 0
          %645 = vmatprep.subr.bf16.mxu0 0
          %646 = vmatpush2.bf16.msra.mxu0 0
          %647 = vmatprep.subr.bf16.mxu0 0
          %648 = vmatpush2.bf16.msra.mxu0 0
          %649 = vmatprep.subr.bf16.mxu0 0
          %650 = vmatpush2.bf16.msra.mxu0 0
          %651 = vmatprep.mubr.bf16.mxu0 0
          %652 = vmatmul.mubr.bf16.gmra.mxu0 %v617
          %v653 = vpop.f32.mrf.mxu0
          %v654 = vadd.f32 %v603, %v653
          %v655 = vpop.f32.mrf.mxu0
          %v656 = vpop.f32.mrf.mxu0
          %v657 = vpop.f32.mrf.mxu0
          %658 = vdwg.mxu0
          %v659 = vadd.f32 %v654, %v499
          %v660 = vadd.f32 %v659, %v594
          %v661 = vxor.u32 %v660, 2147483648
          %v662 = vmul.f32 %v661, 1.442695
          %v663 = vpow.pop %v662
          %v664 = vadd.f32 %v663, 1.0
          %v665 = vrcp.pop %v664
          %v666 = vmul.f32 1.0, %v665
          %v667 = vmul.f32 %v660, %v666
          %v668 = vsel %vm446, %v667, 0.0
          %669 = vadd.xlane.f32.xlu0 %v668
          %v670 = vpop.xlane.xlu0 %669
          %v671 = vmul.f32 %v670, %v479
          %v672 = vsub.f32 %v667, %v671
          %v673 = vmul.f32 %v672, %v672
          %v674 = vsel %vm446, %v673, 0.0
          %675 = vadd.xlane.f32.xlu0 %v674
          %v676 = vpop.xlane.xlu0 %675
          %v677 = vmul.f32 %v676, %v479
          %v678 = vadd.f32 %v677, 0.1
          %v679 = vrsqrt.pop %v678
          %v680 = vmul.f32 %v672, %v679
          %v681 = vlaneseq
          %v682 = vshrl.u32 %v681, 7
          %v683 = vsub.s32 7, %v682
          %v684 = vrot.slane %v452, %v683
          %v685 = vmul.f32 %v680, %v684
          %v686 = vlaneseq
          %v687 = vshrl.u32 %v686, 7
          %v688 = vsub.s32 0, %v687
          %v689 = vrot.slane %v453, %v688
          %v690 = vadd.f32 %v685, %v689
          %v691 = vpack.c.bf16 %v690, %v690
          %v692 = vld [vmem:[%s4] sm:$0xff]
          %v693 = vld [vmem:[%s4 + $0x8] sm:$0xff]
          %v694 = vld [vmem:[%s4 + $0x10] sm:$0xff]
          %v695 = vld [vmem:[%s4 + $0x18] sm:$0xff]
          %v696 = vld [vmem:[%s6] sm:$0x3]
          %v698 = vlaneseq
          %v699 = vshrl.u32 %v698, 7
          %v700 = vsub.s32 0, %v699
          %v701 = vrot.slane %v696, %v700
          %v702 = vlaneseq
          %v703 = vshrl.u32 %v702, 7
          %v704 = vsub.s32 1, %v703
          %v705 = vrot.slane %v696, %v704
          %v712 = vunpack.c.l.b16 %v692
          %v713 = vunpack.c.h.b16 %v692
          %v714 = vunpack.c.l.b16 %v693
          %v715 = vunpack.c.h.b16 %v693
          %v716 = vunpack.c.l.b16 %v694
          %v717 = vunpack.c.h.b16 %v694
          %v718 = vunpack.c.l.b16 %v695
          %v719 = vunpack.c.h.b16 %v695
          %v720 = vpack.c.b16 %v714, %v712
          %v721 = vpack.c.b16 %v715, %v713
          %v722 = vpack.c.b16 %v718, %v716
          %v723 = vpack.c.b16 %v719, %v717
          %v729 = vsel %vm446, %v691, 0
          %731 = vmatprep.subr.bf16.mxu0 0
          %732 = vmatpush1.bf16.msra.mxu0 0
          %733 = vmatprep.subr.bf16.mxu0 0
          %734 = vmatpush1.bf16.msra.mxu0 0
          %735 = vmatprep.subr.bf16.mxu0 0
          %736 = vmatpush1.bf16.msra.mxu0 0
          %737 = vmatprep.subr.bf16.mxu0 0
          %738 = vmatpush1.bf16.msra.mxu0 0
          %739 = vmatprep.subr.bf16.mxu0 0
          %740 = vmatpush1.bf16.msra.mxu0 0
          %741 = vmatprep.subr.bf16.mxu0 0
          %742 = vmatpush1.bf16.msra.mxu0 0
          %743 = vmatprep.subr.bf16.mxu0 %v723
          %744 = vmatpush1.bf16.msra.mxu0 %v722
          %745 = vmatprep.subr.bf16.mxu0 %v721
          %746 = vmatpush1.bf16.msra.mxu0 %v720
          %747 = vmatprep.subr.bf16.mxu0 0
          %748 = vmatpush2.bf16.msra.mxu0 0
          %749 = vmatprep.subr.bf16.mxu0 0
          %750 = vmatpush2.bf16.msra.mxu0 0
          %751 = vmatprep.subr.bf16.mxu0 0
          %752 = vmatpush2.bf16.msra.mxu0 0
          %753 = vmatprep.subr.bf16.mxu0 0
          %754 = vmatpush2.bf16.msra.mxu0 0
          %755 = vmatprep.subr.bf16.mxu0 0
          %756 = vmatpush2.bf16.msra.mxu0 0
          %757 = vmatprep.subr.bf16.mxu0 0
          %758 = vmatpush2.bf16.msra.mxu0 0
          %759 = vmatprep.subr.bf16.mxu0 0
          %760 = vmatpush2.bf16.msra.mxu0 0
          %761 = vmatprep.subr.bf16.mxu0 0
          %762 = vmatpush2.bf16.msra.mxu0 0
          %763 = vmatprep.mubr.bf16.mxu0 0
          %764 = vmatmul.mubr.bf16.gmra.mxu0 %v729
          %v765 = vpop.f32.mrf.mxu0
          %v766 = vadd.f32 %v701, %v765
          %v767 = vpop.f32.mrf.mxu0
          %v768 = vadd.f32 %v705, %v767
          %v769 = vpop.f32.mrf.mxu0
          %v770 = vpop.f32.mrf.mxu0
          %771 = vdwg.mxu0
          %772 = vst [vmem:[%s307] sm:$0xff] %v766
          %773 = vst [vmem:[%s307 + $0x8] sm:$0xff] %v768
        $region56: #{tpu_custom_call.1} parent=47 // pred_fallthru
          _
        %s774 = sand.u32 %s200, 1
        %s775 = scalar_lea.sflag [#allocation5], %s774
        %s776 = sand.u32 %s200, 1
        %s777 = smul.addr %s776, 16
        %s778 = scalar_lea.vmem [#allocation4], %s777
        // Predicated region
        $region57: #{tpu_custom_call.1} parent=47 // pred_check
          %p779 = pneg %p210
        $region58: #{tpu_custom_call.1} parent=47 // pred_check_branch
          %781 = sbr.rel (%p779) target = $region60
        $region59: #{tpu_custom_call.1} parent=47 // pred_region
          %s783 = ssub.s32 256, 256
          %784 = vsyncadd %s775, %s783
          %s785 = smul.addr %s25, 2
          %s786 = smul.addr %s785, 128
          %s787 = scalar_lea.hbm %s7, %s786
          %s789 = sshll.u32 %s778, 4
          %s790 = int_to_ptr.vmem [resolvable:$true] %s789
          %792 = dma.vmem_to_hbm [thread:$0]  %s790, 256, %s787, %s775
        $region60: #{tpu_custom_call.1} parent=47 // pred_fallthru
          _
      $region48: #{tpu_custom_call.1} parent=5 // pred_fallthru
        _
      %p793 = scmp.le.s32.totalorder 2, %s16
      // Predicated region
      $region61: #{tpu_custom_call.1} parent=5 // pred_check
        %p794 = pneg %p793
      $region62: #{tpu_custom_call.1} parent=5 // pred_check_branch
        %796 = sbr.rel (%p794) target = $region64
      $region63: #{tpu_custom_call.1} parent=5 // pred_region
        %s797 = ssub.s32 %s16, 2
        // Predicated region
        $region65: #{tpu_custom_call.1} parent=63 // pred_check
          %p798 = pneg %p216
        $region66: #{tpu_custom_call.1} parent=63 // pred_check_branch
          %800 = sbr.rel (%p798) target = $region68
        $region67: #{tpu_custom_call.1} parent=63 // pred_region
          %s801 = sand.u32 %s201, 1
          %s802 = scalar_lea.sflag [#allocation5], %s801
          %s803 = sand.u32 %s201, 1
          %s804 = smul.addr %s803, 16
          %s805 = scalar_lea.vmem [#allocation4], %s804
          %806 = dma.done %s802, 256
        $region68: #{tpu_custom_call.1} parent=63 // pred_fallthru
          _
      $region64: #{tpu_custom_call.1} parent=5 // pred_fallthru
        _
    $region6: #{tpu_custom_call.1} parent=1 // loop_footer
      %s20 = sadd.s32 1, %s16
    $region7: #{tpu_custom_call.1} parent=1 // loop_footer_branch
      %15 = sbr.rel target = $region3
    $region8: #{tpu_custom_call.1} parent=1 // loop_exit
      _
    %807 = vsyncpa [#allocation5], 1
    %s808 = scalar_lea.sflag [#allocation5], 1
    %809 = vsyncpa %s808, 1

// kernel: tpu_custom_call.1
$region0: #{tpu_custom_call.1}
  #allocation0 [shape = 'u32[]', space=smem, size = 0x4, offset = 0x4, fixed_abs, tag = 'smem constant byte address 0x4 - core index']
  #allocation1 [shape = 'u32[144,128]{1,0:T(1,128)}', space=vmem, size = 0x12000, scoped, tag = 'internal scratch']
  #allocation2 [shape = 'f32[8,32]{1,0:T(8,128)}', space=vmem, size = 0x1000, scoped, tag = 'scratch operand']
  #allocation3 [shape = 'f32[8,1]{1,0:T(8,128)}', space=vmem, size = 0x1000, scoped, tag = 'scratch operand']
  %s0 = inlined_call_operand.vmem [shape: bf16[16,256], index: 0, kind: input, shape index: {}]
  %s1 = inlined_call_operand.vmem [shape: bf16[256,32], index: 1, kind: input, shape index: {}]
  %s2 = inlined_call_operand.vmem [shape: bf16[32,32], index: 2, kind: input, shape index: {}]
  %s3 = inlined_call_operand.vmem [shape: bf16[32,32], index: 3, kind: input, shape index: {}]
  %s4 = inlined_call_operand.vmem [shape: bf16[32,256], index: 4, kind: input, shape index: {}]
  %s5 = inlined_call_operand.vmem [shape: f32[16,32], index: 5, kind: input, shape index: {}]
  %s6 = inlined_call_operand.vmem [shape: f32[1,256], index: 6, kind: input, shape index: {}]
  %s7 = inlined_call_operand.hbm [shape: f32[16,256], index: 7, kind: output, shape index: {}]
  %s8 = sld [smem:[#allocation0]]
  $region69: #{tpu_custom_call.1} parent=0
    _
  %s10 = ssub.s32 1, %s8
  %s11 = scalar_select 0, %s10, %s8
  $region1: #{tpu_custom_call.1} parent=0
    #allocation4 [shape = 'u8[16384]{0}', space=vmem, size = 0x4000, scoped, tag = 'output window, operand 0']
    #allocation5 [shape = 's32[2]{0}', space=sflag, size = 0x8, scoped, tag = 'scoped memory for tpu_custom_call.1']
    %12 = vsyncpa [#allocation5], 0
    %s13 = scalar_lea.sflag [#allocation5], 1
    %14 = vsyncpa %s13, 0
    loop: start=0, step=1, limit=6
    $region2: #{tpu_custom_call.1} parent=1 // loop_pre_header
      _
    $region3: #{tpu_custom_call.1} parent=1 // loop_header
      %s16 = sphi 0, %s20
      %p17 = scmp.ge.s32.totalorder %s16, 6
      %s23 = sphi 0, %s35
      %s24 = sphi 0, %s31
      %s25 = sphi 0, %s23
      %s26 = sphi 0, %s24
      %s27 = sphi 0, %s25
      %s28 = sphi 0, %s26
      %s40 = sphi 0, %s42
      %s43 = sphi 0, %s40
      %s44 = sphi 0, %s43
      %s60 = sphi 0, %s44
      %s66 = sphi 0, %s68
      %s69 = sphi 0, %s66
      %s70 = sphi 0, %s69
      %s86 = sphi 0, %s70
      %s90 = sphi 0, %s90
      %s92 = sphi 0, %s90
      %s93 = sphi 0, %s92
      %s107 = sphi 0, %s93
      %s111 = sphi 0, %s111
      %s113 = sphi 0, %s111
      %s114 = sphi 0, %s113
      %s128 = sphi 0, %s114
      %s132 = sphi 0, %s132
      %s134 = sphi 0, %s132
      %s135 = sphi 0, %s134
      %s149 = sphi 0, %s135
      %s153 = sphi 0, %s153
      %s155 = sphi 0, %s153
      %s156 = sphi 0, %s155
      %s170 = sphi 0, %s156
      %s174 = sphi 0, %s174
      %s176 = sphi 0, %s174
      %s177 = sphi 0, %s176
      %s191 = sphi 0, %s177
      %s197 = sphi 0, %s199
      %s200 = sphi 0, %s197
      %s201 = sphi 0, %s200
      %s217 = sphi 0, %s201
    $region4: #{tpu_custom_call.1} parent=1 // loop_header_branch
      %19 = sbr.rel (%p17) target = $region8
    $region5: #{tpu_custom_call.1} parent=1 // loop_body
      %s21 = ssub.s32 %s16, 1
      %s22 = ssub.s32 %s16, 2
      %s29 = sadd.s32 1, %s24
      %p30 = scmp.ge.s32.totalorder %s29, 2
      %s31 = scalar_select %p30, 0, %s29
      %s32 = sadd.s32 1, %s23
      %s33 = scalar_select %p30, %s32, %s23
      %p34 = scmp.ge.s32.totalorder %s33, 2
      %s35 = scalar_select %p34, 0, %s33
      %s36 = ssub.s32 %s23, %s35
      %s37 = ssub.s32 %s24, %s31
      %s38 = sor.u32 %s36, %s37
      %p39 = scmp.eq.s32.totalorder %s38, 0
      %s41 = sadd.s32 %s40, 1
      %s42 = scalar_select %p39, %s40, %s41
      %p45 = pneg %p39
      %p46 = scmp.eq.s32.totalorder %s16, 3
      %p47 = por %p45, %p46
      %p48 = scmp.ne.s32.totalorder %s40, %s43
      %p49 = scmp.eq.s32.totalorder %s16, 0
      %p50 = por %p48, %p49
      %p51 = scmp.ne.s32.totalorder %s40, %s43
      %p52 = scmp.eq.s32.totalorder %s21, 3
      %p53 = por %p51, %p52
      %p54 = scmp.ne.s32.totalorder %s43, %s44
      %p55 = scmp.eq.s32.totalorder %s21, 0
      %p56 = por %p54, %p55
      %p57 = scmp.ne.s32.totalorder %s43, %s44
      %p58 = scmp.eq.s32.totalorder %s22, 3
      %p59 = por %p57, %p58
      %p61 = scmp.ne.s32.totalorder %s44, %s60
      %p62 = scmp.eq.s32.totalorder %s22, 0
      %p63 = por %p61, %p62
      %s64 = ssub.s32 %s24, %s31
      %p65 = scmp.eq.s32.totalorder %s64, 0
      %s67 = sadd.s32 %s66, 1
      %s68 = scalar_select %p65, %s66, %s67
      %p71 = pneg %p65
      %p72 = scmp.eq.s32.totalorder %s16, 3
      %p73 = por %p71, %p72
      %p74 = scmp.ne.s32.totalorder %s66, %s69
      %p75 = scmp.eq.s32.totalorder %s16, 0
      %p76 = por %p74, %p75
      %p77 = scmp.ne.s32.totalorder %s66, %s69
      %p78 = scmp.eq.s32.totalorder %s21, 3
      %p79 = por %p77, %p78
      %p80 = scmp.ne.s32.totalorder %s69, %s70
      %p81 = scmp.eq.s32.totalorder %s21, 0
      %p82 = por %p80, %p81
      %p83 = scmp.ne.s32.totalorder %s69, %s70
      %p84 = scmp.eq.s32.totalorder %s22, 3
      %p85 = por %p83, %p84
      %p87 = scmp.ne.s32.totalorder %s70, %s86
      %p88 = scmp.eq.s32.totalorder %s22, 0
      %p89 = por %p87, %p88
      %s91 = sadd.s32 %s90, 1
      %p94 = scmp.eq.s32.totalorder %s16, 3
      %p95 = scmp.ne.s32.totalorder %s90, %s92
      %p96 = scmp.eq.s32.totalorder %s16, 0
      %p97 = por %p95, %p96
      %p98 = scmp.ne.s32.totalorder %s90, %s92
      %p99 = scmp.eq.s32.totalorder %s21, 3
      %p100 = por %p98, %p99
      %p101 = scmp.ne.s32.totalorder %s92, %s93
      %p102 = scmp.eq.s32.totalorder %s21, 0
      %p103 = por %p101, %p102
      %p104 = scmp.ne.s32.totalorder %s92, %s93
      %p105 = scmp.eq.s32.totalorder %s22, 3
      %p106 = por %p104, %p105
      %p108 = scmp.ne.s32.totalorder %s93, %s107
      %p109 = scmp.eq.s32.totalorder %s22, 0
      %p110 = por %p108, %p109
      %s112 = sadd.s32 %s111, 1
      %p115 = scmp.eq.s32.totalorder %s16, 3
      %p116 = scmp.ne.s32.totalorder %s111, %s113
      %p117 = scmp.eq.s32.totalorder %s16, 0
      %p118 = por %p116, %p117
      %p119 = scmp.ne.s32.totalorder %s111, %s113
      %p120 = scmp.eq.s32.totalorder %s21, 3
      %p121 = por %p119, %p120
      %p122 = scmp.ne.s32.totalorder %s113, %s114
      %p123 = scmp.eq.s32.totalorder %s21, 0
      %p124 = por %p122, %p123
      %p125 = scmp.ne.s32.totalorder %s113, %s114
      %p126 = scmp.eq.s32.totalorder %s22, 3
      %p127 = por %p125, %p126
      %p129 = scmp.ne.s32.totalorder %s114, %s128
      %p130 = scmp.eq.s32.totalorder %s22, 0
      %p131 = por %p129, %p130
      %s133 = sadd.s32 %s132, 1
      %p136 = scmp.eq.s32.totalorder %s16, 3
      %p137 = scmp.ne.s32.totalorder %s132, %s134
      %p138 = scmp.eq.s32.totalorder %s16, 0
      %p139 = por %p137, %p138
      %p140 = scmp.ne.s32.totalorder %s132, %s134
      %p141 = scmp.eq.s32.totalorder %s21, 3
      %p142 = por %p140, %p141
      %p143 = scmp.ne.s32.totalorder %s134, %s135
      %p144 = scmp.eq.s32.totalorder %s21, 0
      %p145 = por %p143, %p144
      %p146 = scmp.ne.s32.totalorder %s134, %s135
      %p147 = scmp.eq.s32.totalorder %s22, 3
      %p148 = por %p146, %p147
      %p150 = scmp.ne.s32.totalorder %s135, %s149
      %p151 = scmp.eq.s32.totalorder %s22, 0
      %p152 = por %p150, %p151
      %s154 = sadd.s32 %s153, 1
      %p157 = scmp.eq.s32.totalorder %s16, 3
      %p158 = scmp.ne.s32.totalorder %s153, %s155
      %p159 = scmp.eq.s32.totalorder %s16, 0
      %p160 = por %p158, %p159
      %p161 = scmp.ne.s32.totalorder %s153, %s155
      %p162 = scmp.eq.s32.totalorder %s21, 3
      %p163 = por %p161, %p162
      %p164 = scmp.ne.s32.totalorder %s155, %s156
      %p165 = scmp.eq.s32.totalorder %s21, 0
      %p166 = por %p164, %p165
      %p167 = scmp.ne.s32.totalorder %s155, %s156
      %p168 = scmp.eq.s32.totalorder %s22, 3
      %p169 = por %p167, %p168
      %p171 = scmp.ne.s32.totalorder %s156, %s170
      %p172 = scmp.eq.s32.totalorder %s22, 0
      %p173 = por %p171, %p172
      %s175 = sadd.s32 %s174, 1
      %p178 = scmp.eq.s32.totalorder %s16, 3
      %p179 = scmp.ne.s32.totalorder %s174, %s176
      %p180 = scmp.eq.s32.totalorder %s16, 0
      %p181 = por %p179, %p180
      %p182 = scmp.ne.s32.totalorder %s174, %s176
      %p183 = scmp.eq.s32.totalorder %s21, 3
      %p184 = por %p182, %p183
      %p185 = scmp.ne.s32.totalorder %s176, %s177
      %p186 = scmp.eq.s32.totalorder %s21, 0
      %p187 = por %p185, %p186
      %p188 = scmp.ne.s32.totalorder %s176, %s177
      %p189 = scmp.eq.s32.totalorder %s22, 3
      %p190 = por %p188, %p189
      %p192 = scmp.ne.s32.totalorder %s177, %s191
      %p193 = scmp.eq.s32.totalorder %s22, 0
      %p194 = por %p192, %p193
      %s195 = ssub.s32 %s23, %s35
      %p196 = scmp.eq.s32.totalorder %s195, 0
      %s198 = sadd.s32 %s197, 1
      %s199 = scalar_select %p196, %s197, %s198
      %p202 = pneg %p196
      %p203 = scmp.eq.s32.totalorder %s16, 3
      %p204 = por %p202, %p203
      %p205 = scmp.ne.s32.totalorder %s197, %s200
      %p206 = scmp.eq.s32.totalorder %s16, 0
      %p207 = por %p205, %p206
      %p208 = scmp.ne.s32.totalorder %s197, %s200
      %p209 = scmp.eq.s32.totalorder %s21, 3
      %p210 = por %p208, %p209
      %p211 = scmp.ne.s32.totalorder %s200, %s201
      %p212 = scmp.eq.s32.totalorder %s21, 0
      %p213 = por %p211, %p212
      %p214 = scmp.ne.s32.totalorder %s200, %s201
      %p215 = scmp.eq.s32.totalorder %s22, 3
      %p216 = por %p214, %p215
      %p218 = scmp.ne.s32.totalorder %s201, %s217
      %p219 = scmp.eq.s32.totalorder %s22, 0
      %p220 = por %p218, %p219
      %p221 = scmp.le.s32.totalorder 1, %s16
      %p222 = scmp.lt.s32.totalorder %s16, 5
      %p223 = pnand %p221, %p222
      %p224 = pneg %p223
      // Predicated region
      $region9: #{tpu_custom_call.1} parent=5 // pred_check
        _
      $region10: #{tpu_custom_call.1} parent=5 // pred_check_branch
        %226 = sbr.rel (%p223) target = $region12
      $region11: #{tpu_custom_call.1} parent=5 // pred_region
        %s227 = ssub.s32 %s16, 1
        // Predicated region
        $region13: #{tpu_custom_call.1} parent=11 // pred_check
          %p228 = pneg %p103
        $region14: #{tpu_custom_call.1} parent=11 // pred_check_branch
          %230 = sbr.rel (%p228) target = $region16
        $region15: #{tpu_custom_call.1} parent=11 // pred_region
          _
        $region16: #{tpu_custom_call.1} parent=11 // pred_fallthru
          _
        // Predicated region
        $region17: #{tpu_custom_call.1} parent=11 // pred_check
          %p231 = pneg %p124
        $region18: #{tpu_custom_call.1} parent=11 // pred_check_branch
          %233 = sbr.rel (%p231) target = $region20
        $region19: #{tpu_custom_call.1} parent=11 // pred_region
          _
        $region20: #{tpu_custom_call.1} parent=11 // pred_fallthru
          _
        // Predicated region
        $region21: #{tpu_custom_call.1} parent=11 // pred_check
          %p234 = pneg %p145
        $region22: #{tpu_custom_call.1} parent=11 // pred_check_branch
          %236 = sbr.rel (%p234) target = $region24
        $region23: #{tpu_custom_call.1} parent=11 // pred_region
          _
        $region24: #{tpu_custom_call.1} parent=11 // pred_fallthru
          _
        // Predicated region
        $region25: #{tpu_custom_call.1} parent=11 // pred_check
          %p237 = pneg %p166
        $region26: #{tpu_custom_call.1} parent=11 // pred_check_branch
          %239 = sbr.rel (%p237) target = $region28
        $region27: #{tpu_custom_call.1} parent=11 // pred_region
          _
        $region28: #{tpu_custom_call.1} parent=11 // pred_fallthru
          _
        // Predicated region
        $region29: #{tpu_custom_call.1} parent=11 // pred_check
          %p240 = pneg %p187
        $region30: #{tpu_custom_call.1} parent=11 // pred_check_branch
          %242 = sbr.rel (%p240) target = $region32
        $region31: #{tpu_custom_call.1} parent=11 // pred_region
          _
        $region32: #{tpu_custom_call.1} parent=11 // pred_fallthru
          _
      $region12: #{tpu_custom_call.1} parent=5 // pred_fallthru
        _
      %p243 = scmp.lt.s32.totalorder %s16, 4
      // Predicated region
      $region33: #{tpu_custom_call.1} parent=5 // pred_check
        %p244 = pneg %p243
      $region34: #{tpu_custom_call.1} parent=5 // pred_check_branch
        %246 = sbr.rel (%p244) target = $region36
      $region35: #{tpu_custom_call.1} parent=5 // pred_region
        // Predicated region
        $region37: #{tpu_custom_call.1} parent=35 // pred_check
          %p247 = pneg %p50
        $region38: #{tpu_custom_call.1} parent=35 // pred_check_branch
          %249 = sbr.rel (%p247) target = $region40
        $region39: #{tpu_custom_call.1} parent=35 // pred_region
          %p250 = scmp.lt.s32.totalorder %s23, 1
          %s251 = scalar_select %p250, %s23, 1
          %p252 = scmp.lt.s32.totalorder %s24, 1
          %s253 = scalar_select %p252, %s24, 1
          %s254 = smul.addr %s251, 2
          %s255 = sadd.s32 %s253, %s254
          %s256 = smul.addr %s255, 4
          %s257 = scalar_lea.vmem %s0, %s256
        $region40: #{tpu_custom_call.1} parent=35 // pred_fallthru
          _
        // Predicated region
        $region41: #{tpu_custom_call.1} parent=35 // pred_check
          %p258 = pneg %p76
        $region42: #{tpu_custom_call.1} parent=35 // pred_check_branch
          %260 = sbr.rel (%p258) target = $region44
        $region43: #{tpu_custom_call.1} parent=35 // pred_region
          %s261 = smul.u32 16, %s24
          %p262 = scmp.lt.s32.totalorder %s261, 31
          %s263 = scalar_select %p262, %s261, 31
          %s264 = smul.addr %s263, 4
          %s265 = scalar_lea.vmem %s1, %s264
          %s266 = smul.u32 16, %s24
        $region44: #{tpu_custom_call.1} parent=35 // pred_fallthru
          _
      $region36: #{tpu_custom_call.1} parent=5 // pred_fallthru
        _
      %p267 = scmp.le.s32.totalorder 1, %s16
      %p268 = scmp.lt.s32.totalorder %s16, 5
      %p269 = pnand %p267, %p268
      %p270 = pneg %p269
      // Predicated region
      $region45: #{tpu_custom_call.1} parent=5 // pred_check
        _
      $region46: #{tpu_custom_call.1} parent=5 // pred_check_branch
        %272 = sbr.rel (%p269) target = $region48
      $region47: #{tpu_custom_call.1} parent=5 // pred_region
        %s273 = ssub.s32 %s16, 1
        %p274 = scmp.lt.s32.totalorder %s25, 1
        %s275 = scalar_select %p274, %s25, 1
        %p276 = scmp.lt.s32.totalorder %s26, 1
        %s277 = scalar_select %p276, %s26, 1
        %s278 = smul.addr %s275, 2
        %s279 = sadd.s32 %s277, %s278
        %s280 = smul.addr %s279, 4
        %s281 = scalar_lea.vmem %s0, %s280
        %p282 = pneg %p56
        %p283 = pneg %p53
        %s284 = smul.u32 16, %s26
        %p285 = scmp.lt.s32.totalorder %s284, 31
        %s286 = scalar_select %p285, %s284, 31
        %s287 = smul.addr %s286, 4
        %s288 = scalar_lea.vmem %s1, %s287
        %p289 = pneg %p82
        %p290 = pneg %p79
        %p291 = pneg %p103
        %p292 = pneg %p100
        %p293 = pneg %p124
        %p294 = pneg %p121
        %p295 = pneg %p145
        %p296 = pneg %p142
        %p297 = pneg %p166
        %p298 = pneg %p163
        %p299 = pneg %p187
        %p300 = pneg %p184
        %p301 = pneg %p213
        %p302 = pneg %p210
        %s303 = sand.u32 %s200, 1
        %s304 = scalar_lea.sflag [#allocation5], %s303
        %s305 = sand.u32 %s200, 1
        %s306 = smul.addr %s305, 16
        %s307 = scalar_lea.vmem [#allocation4], %s306
        %p308 = scmp.lt.s32.totalorder %s25, 1
        %s309 = scalar_select %p308, %s25, 1
        %p310 = scmp.lt.s32.totalorder %s26, 1
        %s311 = scalar_select %p310, %s26, 1
        %s312 = smul.addr %s309, 2
        %s313 = sadd.s32 %s311, %s312
        %s314 = smul.addr %s313, 4
        %s315 = scalar_lea.vmem %s0, %s314
        %s316 = smul.u32 16, %s26
        %p317 = scmp.lt.s32.totalorder %s316, 31
        %s318 = scalar_select %p317, %s316, 31
        %s319 = smul.addr %s318, 4
        %s320 = scalar_lea.vmem %s1, %s319
        %s321 = smul.u32 16, %s26
        %p323 = scmp.eq.s32.totalorder %s26, 0
        // Predicated region
        $region49: #{tpu_custom_call.1} parent=47 // pred_check
          %p324 = pneg %p323
        $region50: #{tpu_custom_call.1} parent=47 // pred_check_branch
          %326 = sbr.rel (%p324) target = $region52
        $region51: #{tpu_custom_call.1} parent=47 // pred_region
          %vm327 = vcmask 261120
          %328 = vst.msk [vmem:[#allocation2] sm:$0xff] %vm327, 0.0
          %vm329 = vcmask 7168
          %330 = vst.msk [vmem:[#allocation3] sm:$0xff] %vm329, 0.0
        $region52: #{tpu_custom_call.1} parent=47 // pred_fallthru
          _
        %v331 = vld [vmem:[%s315] sm:$0xf]
        %v332 = vunpack.c.l.bf16 %v331
        %v333 = vld [vmem:[#allocation3] sm:$0xff]
        %v334 = vmul.f32 %v332, %v332
        %335 = vadd.xlane.f32.xlu0 %v334
        %v336 = vpop.xlane.xlu0 %335
        %v337 = vadd.f32 %v333, %v336
        %vm338 = vcmask 7168
        %339 = vst.msk [vmem:[#allocation3] sm:$0xff] %vm338, %v337
        %v340 = vld [vmem:[#allocation2] sm:$0xff]
        %v341 = vld [vmem:[%s320] sm:$0xf]
        %v342 = vld [vmem:[%s320 + $0x4] sm:$0xf]
        %v343 = vld [vmem:[%s320 + $0x8] sm:$0xf]
        %v344 = vld [vmem:[%s320 + $0xc] sm:$0xf]
        %v345 = vld [vmem:[%s320 + $0x10] sm:$0xf]
        %v346 = vld [vmem:[%s320 + $0x14] sm:$0xf]
        %v347 = vld [vmem:[%s320 + $0x18] sm:$0xf]
        %v348 = vld [vmem:[%s320 + $0x1c] sm:$0xf]
        %v349 = vld [vmem:[%s320 + $0x20] sm:$0xf]
        %v350 = vld [vmem:[%s320 + $0x24] sm:$0xf]
        %v351 = vld [vmem:[%s320 + $0x28] sm:$0xf]
        %v352 = vld [vmem:[%s320 + $0x2c] sm:$0xf]
        %v353 = vld [vmem:[%s320 + $0x30] sm:$0xf]
        %v354 = vld [vmem:[%s320 + $0x34] sm:$0xf]
        %v355 = vld [vmem:[%s320 + $0x38] sm:$0xf]
        %v356 = vld [vmem:[%s320 + $0x3c] sm:$0xf]
        %v373 = vunpack.c.l.b16 %v341
        %v374 = vunpack.c.l.b16 %v342
        %v375 = vunpack.c.l.b16 %v343
        %v376 = vunpack.c.l.b16 %v344
        %v377 = vunpack.c.l.b16 %v345
        %v378 = vunpack.c.l.b16 %v346
        %v379 = vunpack.c.l.b16 %v347
        %v380 = vunpack.c.l.b16 %v348
        %v381 = vunpack.c.l.b16 %v349
        %v382 = vunpack.c.l.b16 %v350
        %v383 = vunpack.c.l.b16 %v351
        %v384 = vunpack.c.l.b16 %v352
        %v385 = vunpack.c.l.b16 %v353
        %v386 = vunpack.c.l.b16 %v354
        %v387 = vunpack.c.l.b16 %v355
        %v388 = vunpack.c.l.b16 %v356
        %v389 = vpack.c.b16 %v374, %v373
        %v390 = vpack.c.b16 %v376, %v375
        %v391 = vpack.c.b16 %v378, %v377
        %v392 = vpack.c.b16 %v380, %v379
        %v393 = vpack.c.b16 %v382, %v381
        %v394 = vpack.c.b16 %v384, %v383
        %v395 = vpack.c.b16 %v386, %v385
        %v396 = vpack.c.b16 %v388, %v387
        %405 = vmatprep.subr.bf16.mxu0 0
        %406 = vmatpush1.bf16.msra.mxu0 %v396
        %407 = vmatprep.subr.bf16.mxu0 0
        %408 = vmatpush1.bf16.msra.mxu0 %v395
        %409 = vmatprep.subr.bf16.mxu0 0
        %410 = vmatpush1.bf16.msra.mxu0 %v394
        %411 = vmatprep.subr.bf16.mxu0 0
        %412 = vmatpush1.bf16.msra.mxu0 %v393
        %413 = vmatprep.subr.bf16.mxu0 0
        %414 = vmatpush1.bf16.msra.mxu0 %v392
        %415 = vmatprep.subr.bf16.mxu0 0
        %416 = vmatpush1.bf16.msra.mxu0 %v391
        %417 = vmatprep.subr.bf16.mxu0 0
        %418 = vmatpush1.bf16.msra.mxu0 %v390
        %419 = vmatprep.subr.bf16.mxu0 0
        %420 = vmatpush1.bf16.msra.mxu0 %v389
        %421 = vmatprep.subr.bf16.mxu0 0
        %422 = vmatpush2.bf16.msra.mxu0 0
        %423 = vmatprep.subr.bf16.mxu0 0
        %424 = vmatpush2.bf16.msra.mxu0 0
        %425 = vmatprep.subr.bf16.mxu0 0
        %426 = vmatpush2.bf16.msra.mxu0 0
        %427 = vmatprep.subr.bf16.mxu0 0
        %428 = vmatpush2.bf16.msra.mxu0 0
        %429 = vmatprep.subr.bf16.mxu0 0
        %430 = vmatpush2.bf16.msra.mxu0 0
        %431 = vmatprep.subr.bf16.mxu0 0
        %432 = vmatpush2.bf16.msra.mxu0 0
        %433 = vmatprep.subr.bf16.mxu0 0
        %434 = vmatpush2.bf16.msra.mxu0 0
        %435 = vmatprep.subr.bf16.mxu0 0
        %436 = vmatpush2.bf16.msra.mxu0 0
        %437 = vmatprep.mubr.bf16.mxu0 0
        %438 = vmatmul.mubr.bf16.gmra.mxu0 %v331
        %v439 = vpop.f32.mrf.mxu0
        %v440 = vadd.f32 0.0, %v439
        %v441 = vpop.f32.mrf.mxu0
        %v442 = vpop.f32.mrf.mxu0
        %v443 = vpop.f32.mrf.mxu0
        %444 = vdwg.mxu0
        %v445 = vadd.f32 %v340, %v440
        %vm446 = vcmask 261120
        %447 = vst.msk [vmem:[#allocation2] sm:$0xff] %vm446, %v445
        %p448 = scmp.eq.s32.totalorder %s26, 1
        // Predicated region
        $region53: #{tpu_custom_call.1} parent=47 // pred_check
          %p449 = pneg %p448
        $region54: #{tpu_custom_call.1} parent=47 // pred_check_branch
          %451 = sbr.rel (%p449) target = $region56
        $region55: #{tpu_custom_call.1} parent=47 // pred_region
          %v452 = vld [vmem:[%s5] sm:$0xff]
          %v453 = vld [vmem:[%s5 + $0x8] sm:$0xff]
          %v454 = vld [vmem:[#allocation3] sm:$0xff]
          %v455 = vmax.f32 %v454, 1e-24
          %v456 = vrsqrt.pop %v455
          %v457 = vld [vmem:[#allocation2] sm:$0xff]
          %459 = vset.pattern.permute.xlu0 0
          %460 = vperm.xlu0 %459, %v456
          %v461 = vpop.permute.xlu0 %460
          %v463 = vmul.f32 %v457, %v461
          %v464 = vlaneseq
          %v465 = vshrl.u32 %v464, 7
          %v466 = vsub.s32 0, %v465
          %v467 = vrot.slane %v452, %v466
          %v468 = vadd.f32 %v463, %v467
          %v469 = vxor.u32 %v468, 2147483648
          %v470 = vmul.f32 %v469, 1.442695
          %v471 = vpow.pop %v470
          %v472 = vadd.f32 %v471, 1.0
          %v473 = vrcp.pop %v472
          %v474 = vmul.f32 1.0, %v473
          %v475 = vmul.f32 %v468, %v474
          %v476 = vsel %vm446, %v475, 0.0
          %477 = vadd.xlane.f32.xlu0 %v476
          %v478 = vpop.xlane.xlu0 %477
          %v479 = vrcp.pop 32.0
          %v480 = vmul.f32 %v478, %v479
          %v481 = vsub.f32 %v475, %v480
          %v482 = vmul.f32 %v481, %v481
          %v483 = vsel %vm446, %v482, 0.0
          %484 = vadd.xlane.f32.xlu0 %v483
          %v485 = vpop.xlane.xlu0 %484
          %v486 = vmul.f32 %v485, %v479
          %v487 = vadd.f32 %v486, 0.1
          %v488 = vrsqrt.pop %v487
          %v489 = vmul.f32 %v481, %v488
          %v490 = vlaneseq
          %v491 = vshrl.u32 %v490, 7
          %v492 = vsub.s32 1, %v491
          %v493 = vrot.slane %v452, %v492
          %v494 = vmul.f32 %v489, %v493
          %v495 = vlaneseq
          %v496 = vshrl.u32 %v495, 7
          %v497 = vsub.s32 2, %v496
          %v498 = vrot.slane %v452, %v497
          %v499 = vadd.f32 %v494, %v498
          %v500 = vpack.c.bf16 %v499, %v499
          %v501 = vld [vmem:[%s2] sm:$0xf]
          %v502 = vld [vmem:[%s2 + $0x4] sm:$0xf]
          %v503 = vld [vmem:[%s2 + $0x8] sm:$0xf]
          %v504 = vld [vmem:[%s2 + $0xc] sm:$0xf]
          %v505 = vlaneseq
          %v506 = vshrl.u32 %v505, 7
          %v507 = vsub.s32 3, %v506
          %v508 = vrot.slane %v452, %v507
          %v513 = vunpack.c.l.b16 %v501
          %v514 = vunpack.c.l.b16 %v502
          %v515 = vunpack.c.l.b16 %v503
          %v516 = vunpack.c.l.b16 %v504
          %v517 = vpack.c.b16 %v514, %v513
          %v518 = vpack.c.b16 %v516, %v515
          %v522 = vsel %vm446, %v500, 0
          %524 = vmatprep.subr.bf16.mxu0 0
          %525 = vmatpush1.bf16.msra.mxu0 0
          %526 = vmatprep.subr.bf16.mxu0 0
          %527 = vmatpush1.bf16.msra.mxu0 0
          %528 = vmatprep.subr.bf16.mxu0 0
          %529 = vmatpush1.bf16.msra.mxu0 0
          %530 = vmatprep.subr.bf16.mxu0 0
          %531 = vmatpush1.bf16.msra.mxu0 0
          %532 = vmatprep.subr.bf16.mxu0 0
          %533 = vmatpush1.bf16.msra.mxu0 0
          %534 = vmatprep.subr.bf16.mxu0 0
          %535 = vmatpush1.bf16.msra.mxu0 0
          %536 = vmatprep.subr.bf16.mxu0 0
          %537 = vmatpush1.bf16.msra.mxu0 %v518
          %538 = vmatprep.subr.bf16.mxu0 0
          %539 = vmatpush1.bf16.msra.mxu0 %v517
          %540 = vmatprep.subr.bf16.mxu0 0
          %541 = vmatpush2.bf16.msra.mxu0 0
          %542 = vmatprep.subr.bf16.mxu0 0
          %543 = vmatpush2.bf16.msra.mxu0 0
          %544 = vmatprep.subr.bf16.mxu0 0
          %545 = vmatpush2.bf16.msra.mxu0 0
          %546 = vmatprep.subr.bf16.mxu0 0
          %547 = vmatpush2.bf16.msra.mxu0 0
          %548 = vmatprep.subr.bf16.mxu0 0
          %549 = vmatpush2.bf16.msra.mxu0 0
          %550 = vmatprep.subr.bf16.mxu0 0
          %551 = vmatpush2.bf16.msra.mxu0 0
          %552 = vmatprep.subr.bf16.mxu0 0
          %553 = vmatpush2.bf16.msra.mxu0 0
          %554 = vmatprep.subr.bf16.mxu0 0
          %555 = vmatpush2.bf16.msra.mxu0 0
          %556 = vmatprep.mubr.bf16.mxu0 0
          %557 = vmatmul.mubr.bf16.gmra.mxu0 %v522
          %v558 = vpop.f32.mrf.mxu0
          %v559 = vadd.f32 %v508, %v558
          %v560 = vpop.f32.mrf.mxu0
          %v561 = vpop.f32.mrf.mxu0
          %v562 = vpop.f32.mrf.mxu0
          %563 = vdwg.mxu0
          %v564 = vadd.f32 %v559, %v499
          %v565 = vxor.u32 %v564, 2147483648
          %v566 = vmul.f32 %v565, 1.442695
          %v567 = vpow.pop %v566
          %v568 = vadd.f32 %v567, 1.0
          %v569 = vrcp.pop %v568
          %v570 = vmul.f32 1.0, %v569
          %v571 = vmul.f32 %v564, %v570
          %v572 = vsel %vm446, %v571, 0.0
          %573 = vadd.xlane.f32.xlu0 %v572
          %v574 = vpop.xlane.xlu0 %573
          %v575 = vmul.f32 %v574, %v479
          %v576 = vsub.f32 %v571, %v575
          %v577 = vmul.f32 %v576, %v576
          %v578 = vsel %vm446, %v577, 0.0
          %579 = vadd.xlane.f32.xlu0 %v578
          %v580 = vpop.xlane.xlu0 %579
          %v581 = vmul.f32 %v580, %v479
          %v582 = vadd.f32 %v581, 0.1
          %v583 = vrsqrt.pop %v582
          %v584 = vmul.f32 %v576, %v583
          %v585 = vlaneseq
          %v586 = vshrl.u32 %v585, 7
          %v587 = vsub.s32 4, %v586
          %v588 = vrot.slane %v452, %v587
          %v589 = vmul.f32 %v584, %v588
          %v590 = vlaneseq
          %v591 = vshrl.u32 %v590, 7
          %v592 = vsub.s32 5, %v591
          %v593 = vrot.slane %v452, %v592
          %v594 = vadd.f32 %v589, %v593
          %v595 = vpack.c.bf16 %v594, %v594
          %v596 = vld [vmem:[%s3] sm:$0xf]
          %v597 = vld [vmem:[%s3 + $0x4] sm:$0xf]
          %v598 = vld [vmem:[%s3 + $0x8] sm:$0xf]
          %v599 = vld [vmem:[%s3 + $0xc] sm:$0xf]
          %v600 = vlaneseq
          %v601 = vshrl.u32 %v600, 7
          %v602 = vsub.s32 6, %v601
          %v603 = vrot.slane %v452, %v602
          %v608 = vunpack.c.l.b16 %v596
          %v609 = vunpack.c.l.b16 %v597
          %v610 = vunpack.c.l.b16 %v598
          %v611 = vunpack.c.l.b16 %v599
          %v612 = vpack.c.b16 %v609, %v608
          %v613 = vpack.c.b16 %v611, %v610
          %v617 = vsel %vm446, %v595, 0
          %619 = vmatprep.subr.bf16.mxu0 0
          %620 = vmatpush1.bf16.msra.mxu0 0
          %621 = vmatprep.subr.bf16.mxu0 0
          %622 = vmatpush1.bf16.msra.mxu0 0
          %623 = vmatprep.subr.bf16.mxu0 0
          %624 = vmatpush1.bf16.msra.mxu0 0
          %625 = vmatprep.subr.bf16.mxu0 0
          %626 = vmatpush1.bf16.msra.mxu0 0
          %627 = vmatprep.subr.bf16.mxu0 0
          %628 = vmatpush1.bf16.msra.mxu0 0
          %629 = vmatprep.subr.bf16.mxu0 0
          %630 = vmatpush1.bf16.msra.mxu0 0
          %631 = vmatprep.subr.bf16.mxu0 0
          %632 = vmatpush1.bf16.msra.mxu0 %v613
          %633 = vmatprep.subr.bf16.mxu0 0
          %634 = vmatpush1.bf16.msra.mxu0 %v612
          %635 = vmatprep.subr.bf16.mxu0 0
          %636 = vmatpush2.bf16.msra.mxu0 0
          %637 = vmatprep.subr.bf16.mxu0 0
          %638 = vmatpush2.bf16.msra.mxu0 0
          %639 = vmatprep.subr.bf16.mxu0 0
          %640 = vmatpush2.bf16.msra.mxu0 0
          %641 = vmatprep.subr.bf16.mxu0 0
          %642 = vmatpush2.bf16.msra.mxu0 0
          %643 = vmatprep.subr.bf16.mxu0 0
          %644 = vmatpush2.bf16.msra.mxu0 0
          %645 = vmatprep.subr.bf16.mxu0 0
          %646 = vmatpush2.bf16.msra.mxu0 0
          %647 = vmatprep.subr.bf16.mxu0 0
          %648 = vmatpush2.bf16.msra.mxu0 0
          %649 = vmatprep.subr.bf16.mxu0 0
          %650 = vmatpush2.bf16.msra.mxu0 0
          %651 = vmatprep.mubr.bf16.mxu0 0
          %652 = vmatmul.mubr.bf16.gmra.mxu0 %v617
          %v653 = vpop.f32.mrf.mxu0
          %v654 = vadd.f32 %v603, %v653
          %v655 = vpop.f32.mrf.mxu0
          %v656 = vpop.f32.mrf.mxu0
          %v657 = vpop.f32.mrf.mxu0
          %658 = vdwg.mxu0
          %v659 = vadd.f32 %v654, %v499
          %v660 = vadd.f32 %v659, %v594
          %v661 = vxor.u32 %v660, 2147483648
          %v662 = vmul.f32 %v661, 1.442695
          %v663 = vpow.pop %v662
          %v664 = vadd.f32 %v663, 1.0
          %v665 = vrcp.pop %v664
          %v666 = vmul.f32 1.0, %v665
          %v667 = vmul.f32 %v660, %v666
          %v668 = vsel %vm446, %v667, 0.0
          %669 = vadd.xlane.f32.xlu0 %v668
          %v670 = vpop.xlane.xlu0 %669
          %v671 = vmul.f32 %v670, %v479
          %v672 = vsub.f32 %v667, %v671
          %v673 = vmul.f32 %v672, %v672
          %v674 = vsel %vm446, %v673, 0.0
          %675 = vadd.xlane.f32.xlu0 %v674
          %v676 = vpop.xlane.xlu0 %675
          %v677 = vmul.f32 %v676, %v479
          %v678 = vadd.f32 %v677, 0.1
          %v679 = vrsqrt.pop %v678
          %v680 = vmul.f32 %v672, %v679
          %v681 = vlaneseq
          %v682 = vshrl.u32 %v681, 7
          %v683 = vsub.s32 7, %v682
          %v684 = vrot.slane %v452, %v683
          %v685 = vmul.f32 %v680, %v684
          %v686 = vlaneseq
          %v687 = vshrl.u32 %v686, 7
          %v688 = vsub.s32 0, %v687
          %v689 = vrot.slane %v453, %v688
          %v690 = vadd.f32 %v685, %v689
          %v691 = vpack.c.bf16 %v690, %v690
          %v692 = vld [vmem:[%s4] sm:$0xff]
          %v693 = vld [vmem:[%s4 + $0x8] sm:$0xff]
          %v694 = vld [vmem:[%s4 + $0x10] sm:$0xff]
          %v695 = vld [vmem:[%s4 + $0x18] sm:$0xff]
          %v696 = vld [vmem:[%s6] sm:$0x3]
          %v698 = vlaneseq
          %v699 = vshrl.u32 %v698, 7
          %v700 = vsub.s32 0, %v699
          %v701 = vrot.slane %v696, %v700
          %v702 = vlaneseq
          %v703 = vshrl.u32 %v702, 7
          %v704 = vsub.s32 1, %v703
          %v705 = vrot.slane %v696, %v704
          %v712 = vunpack.c.l.b16 %v692
          %v713 = vunpack.c.h.b16 %v692
          %v714 = vunpack.c.l.b16 %v693
          %v715 = vunpack.c.h.b16 %v693
          %v716 = vunpack.c.l.b16 %v694
          %v717 = vunpack.c.h.b16 %v694
          %v718 = vunpack.c.l.b16 %v695
          %v719 = vunpack.c.h.b16 %v695
          %v720 = vpack.c.b16 %v714, %v712
          %v721 = vpack.c.b16 %v715, %v713
          %v722 = vpack.c.b16 %v718, %v716
          %v723 = vpack.c.b16 %v719, %v717
          %v729 = vsel %vm446, %v691, 0
          %731 = vmatprep.subr.bf16.mxu0 0
          %732 = vmatpush1.bf16.msra.mxu0 0
          %733 = vmatprep.subr.bf16.mxu0 0
          %734 = vmatpush1.bf16.msra.mxu0 0
          %735 = vmatprep.subr.bf16.mxu0 0
          %736 = vmatpush1.bf16.msra.mxu0 0
          %737 = vmatprep.subr.bf16.mxu0 0
          %738 = vmatpush1.bf16.msra.mxu0 0
          %739 = vmatprep.subr.bf16.mxu0 0
          %740 = vmatpush1.bf16.msra.mxu0 0
          %741 = vmatprep.subr.bf16.mxu0 0
          %742 = vmatpush1.bf16.msra.mxu0 0
          %743 = vmatprep.subr.bf16.mxu0 %v723
          %744 = vmatpush1.bf16.msra.mxu0 %v722
          %745 = vmatprep.subr.bf16.mxu0 %v721
          %746 = vmatpush1.bf16.msra.mxu0 %v720
          %747 = vmatprep.subr.bf16.mxu0 0
          %748 = vmatpush2.bf16.msra.mxu0 0
          %749 = vmatprep.subr.bf16.mxu0 0
          %750 = vmatpush2.bf16.msra.mxu0 0
          %751 = vmatprep.subr.bf16.mxu0 0
          %752 = vmatpush2.bf16.msra.mxu0 0
          %753 = vmatprep.subr.bf16.mxu0 0
          %754 = vmatpush2.bf16.msra.mxu0 0
          %755 = vmatprep.subr.bf16.mxu0 0
          %756 = vmatpush2.bf16.msra.mxu0 0
          %757 = vmatprep.subr.bf16.mxu0 0
          %758 = vmatpush2.bf16.msra.mxu0 0
          %759 = vmatprep.subr.bf16.mxu0 0
          %760 = vmatpush2.bf16.msra.mxu0 0
          %761 = vmatprep.subr.bf16.mxu0 0
          %762 = vmatpush2.bf16.msra.mxu0 0
          %763 = vmatprep.mubr.bf16.mxu0 0
          %764 = vmatmul.mubr.bf16.gmra.mxu0 %v729
          %v765 = vpop.f32.mrf.mxu0
          %v766 = vadd.f32 %v701, %v765
          %v767 = vpop.f32.mrf.mxu0
          %v768 = vadd.f32 %v705, %v767
          %v769 = vpop.f32.mrf.mxu0
          %v770 = vpop.f32.mrf.mxu0
          %771 = vdwg.mxu0
          %772 = vst [vmem:[%s307] sm:$0xff] %v766
          %773 = vst [vmem:[%s307 + $0x8] sm:$0xff] %v768
        $region56: #{tpu_custom_call.1} parent=47 // pred_fallthru
          _
        %s774 = sand.u32 %s200, 1
        %s775 = scalar_lea.sflag [#allocation5], %s774
        %s776 = sand.u32 %s200, 1
        %s777 = smul.addr %s776, 16
        %s778 = scalar_lea.vmem [#allocation4], %s777
        // Predicated region
        $region57: #{tpu_custom_call.1} parent=47 // pred_check
          %p779 = pneg %p210
        $region58: #{tpu_custom_call.1} parent=47 // pred_check_branch
          %781 = sbr.rel (%p779) target = $region60
        $region59: #{tpu_custom_call.1} parent=47 // pred_region
          %s783 = ssub.s32 256, 256
          %784 = vsyncadd %s775, %s783
          %s785 = smul.addr %s25, 2
          %s786 = smul.addr %s785, 128
          %s787 = scalar_lea.hbm %s7, %s786
          %s789 = sshll.u32 %s778, 4
          %s790 = int_to_ptr.vmem [resolvable:$true] %s789
          %792 = dma.vmem_to_hbm [thread:$0]  %s790, 256, %s787, %s775
        $region60: #{tpu_custom_call.1} parent=47 // pred_fallthru
          _
      $region48: #{tpu_custom_call.1} parent=5 // pred_fallthru
        _
      %p793 = scmp.le.s32.totalorder 2, %s16
      // Predicated region
      $region61: #{tpu_custom_call.1} parent=5 // pred_check
        %p794 = pneg %p793
      $region62: #{tpu_custom_call.1} parent=5 // pred_check_branch
        %796 = sbr.rel (%p794) target = $region64
      $region63: #{tpu_custom_call.1} parent=5 // pred_region
        %s797 = ssub.s32 %s16, 2
        // Predicated region
        $region65: #{tpu_custom_call.1} parent=63 // pred_check
          %p798 = pneg %p216
        $region66: #{tpu_custom_call.1} parent=63 // pred_check_branch
          %800 = sbr.rel (%p798) target = $region68
        $region67: #{tpu_custom_call.1} parent=63 // pred_region
          %s801 = sand.u32 %s201, 1
          %s802 = scalar_lea.sflag [#allocation5], %s801
          %s803 = sand.u32 %s201, 1
          %s804 = smul.addr %s803, 16
          %s805 = scalar_lea.vmem [#allocation4], %s804
          %806 = dma.done %s802, 256
        $region68: #{tpu_custom_call.1} parent=63 // pred_fallthru
          _
      $region64: #{tpu_custom_call.1} parent=5 // pred_fallthru
        _
    $region6: #{tpu_custom_call.1} parent=1 // loop_footer
      %s20 = sadd.s32 1, %s16
    $region7: #{tpu_custom_call.1} parent=1 // loop_footer_branch
      %15 = sbr.rel target = $region3
    $region8: #{tpu_custom_call.1} parent=1 // loop_exit
      _
    %807 = vsyncpa [#allocation5], 1
    %s808 = scalar_lea.sflag [#allocation5], 1
    %809 = vsyncpa %s808, 1

</llo_original>
